<compile_context>
chip_gen: v6e
topology: v6e:2x2x1
jax: 0.10.0
libtpu: 0.0.40
codegen_flags: <defaults>
</compile_context>

<pallas_src>
import functools

import jax
import jax.numpy as jnp
from jax.experimental import pallas as pl
from jax.experimental.pallas import tpu as pltpu

SELU_ALPHA = 1.6732632423543772848170429916717
SELU_SCALE = 1.0507009873554804934193349852946

# Geometry (ResNet stem + classifier head, padded to TPU-friendly sizes).
STEM_C = 64                    # conv stem output channels
C_PAD = 128                    # padded to full lane width (lane-dense stores)
STEM_K = 7                     # 7x7 kernel, stride 2, pad 3 (ResNet stem)
STEM_STRIDE = 2
CKK = 3 * STEM_K * STEM_K      # 147
CKK_PAD = 256                  # padded contraction dim (multiple of 128)
FEAT = 1000                    # backbone feature width (ResNet classifier)
FEAT_PAD = 1024                # padded to multiple of 128 for clean MXU tiles
HID1, HID2 = 512, 256
OUT = 2
OUT_PAD = 128                  # lane-dense final store; sliced to 2 outside
K_TILE = 256                   # head: streaming tile of the FEAT_PAD axis
VMEM_LIMIT = 32 * 1024 * 1024  # safe on v5e/v6e (128 MiB) and v7x (64 MiB)


def _selu(x):
    # torch.nn.SELU: scale * (x if x > 0 else alpha * (exp(x) - 1))
    return SELU_SCALE * jnp.where(x > 0.0, x, SELU_ALPHA * (jnp.exp(x) - 1.0))


def _sigmoid(x):
    # Reciprocal on the EUP slot (approx) keeps the epilogue off the VALU.
    return pl.reciprocal(1.0 + jnp.exp(-x), approx=True)


# --------------------------------------------------------------------------
# Kernel 1: conv stem (im2col matmul) + ReLU + global-average-pool, fused.
#   grid = (B, num_row_tiles); per-batch [1, C_PAD] accumulator in VMEM.
# --------------------------------------------------------------------------
def _stem_kernel(p_ref, w_ref, b_ref, o_ref, acc_ref, *, hw_valid, tm):
    t = pl.program_id(1)

    @pl.when(t == 0)
    def _():
        acc_ref[...] = jnp.zeros_like(acc_ref)

    x = p_ref[0]                                                # [TM, CKK_PAD] bf16
    y = jnp.dot(x, w_ref[...], preferred_element_type=jnp.float32) + b_ref[...]
    y = jnp.maximum(y, 0.0)                                     # ReLU
    if hw_valid % tm != 0:                                      # mask padded rows
        row = jax.lax.broadcasted_iota(jnp.int32, (tm, 1), 0) + t * tm
        y = jnp.where(row < hw_valid, y, 0.0)
    acc_ref[...] += jnp.sum(y, axis=0, keepdims=True)           # [1, C_PAD]

    @pl.when(t == pl.num_programs(1) - 1)
    def _():
        pooled = acc_ref[...] * (1.0 / float(hw_valid))         # GAP
        o_ref[...] = jnp.broadcast_to(pooled.reshape(1, 1, C_PAD), (1, 8, C_PAD))


def conv_stem_gap(patches, wc, bc, *, hw_valid, tm):
    B, hw_pad, _ = patches.shape
    n_t = hw_pad // tm
    grid_spec = pltpu.PrefetchScalarGridSpec(
        num_scalar_prefetch=0,
        grid=(B, n_t),
        in_specs=[
            pl.BlockSpec((1, tm, CKK_PAD), lambda b, t: (b, t, 0)),
            pl.BlockSpec((CKK_PAD, C_PAD), lambda b, t: (0, 0)),
            pl.BlockSpec((1, C_PAD), lambda b, t: (0, 0)),
        ],
        out_specs=pl.BlockSpec((1, 8, C_PAD), lambda b, t: (b, 0, 0)),
        scratch_shapes=[pltpu.VMEM((1, C_PAD), jnp.float32)],
    )
    flops = 2 * B * hw_pad * CKK_PAD * C_PAD
    bytes_acc = (patches.size * 2 + wc.size * 2 + bc.size * 4
                 + B * 8 * C_PAD * 4)
    return pl.pallas_call(
        functools.partial(_stem_kernel, hw_valid=hw_valid, tm=tm),
        out_shape=jax.ShapeDtypeStruct((B, 8, C_PAD), jnp.float32),
        grid_spec=grid_spec,
        compiler_params=pltpu.CompilerParams(
            dimension_semantics=("parallel", "arbitrary"),
            vmem_limit_bytes=VMEM_LIMIT),
        cost_estimate=pl.CostEstimate(
            flops=flops, transcendentals=0, bytes_accessed=bytes_acc),
    )(patches, wc, bc)


# --------------------------------------------------------------------------
# Kernel 2: FC(->1024) -> SELU -> Linear(1024,512) streamed over K tiles,
#           then SELU -> Linear(512,256) -> SELU -> Linear(256,2pad) -> Sigmoid.
# --------------------------------------------------------------------------
def _head_kernel(pooled_ref, fcw_ref, fcb_ref, w1_ref, b1_ref,
                 w2_ref, b2_ref, w3_ref, b3_ref, o_ref, acc_ref):
    k = pl.program_id(0)

    @pl.when(k == 0)
    def _():
        acc_ref[...] = jnp.zeros_like(acc_ref)

    # Streamed slice of feat = SELU(pooled @ fcw + fcb), contracted into w1.
    feat_k = jnp.dot(pooled_ref[...], fcw_ref[...],
                     preferred_element_type=jnp.float32) + fcb_ref[...]
    x_k = _selu(feat_k).astype(w1_ref.dtype)
    acc_ref[...] += jnp.dot(x_k, w1_ref[...], preferred_element_type=jnp.float32)

    @pl.when(k == pl.num_programs(0) - 1)
    def _():
        h1 = _selu(acc_ref[...] + b1_ref[...]).astype(w2_ref.dtype)
        h2 = _selu(jnp.dot(h1, w2_ref[...], preferred_element_type=jnp.float32)
                   + b2_ref[...]).astype(w3_ref.dtype)
        logits = (jnp.dot(h2, w3_ref[...], preferred_element_type=jnp.float32)
                  + b3_ref[...])
        o_ref[...] = _sigmoid(logits)


def head_forward(pooled, params):
    B = pooled.shape[0]
    fcw, fcb, w1, b1, w2, b2, w3, b3 = params
    n_k = FEAT_PAD // K_TILE
    grid_spec = pltpu.PrefetchScalarGridSpec(
        num_scalar_prefetch=0,
        grid=(n_k,),
        in_specs=[
            pl.BlockSpec((B, C_PAD), lambda k: (0, 0)),
            pl.BlockSpec((C_PAD, K_TILE), lambda k: (0, k)),
            pl.BlockSpec((1, K_TILE), lambda k: (0, k)),
            pl.BlockSpec((K_TILE, HID1), lambda k: (k, 0)),
            pl.BlockSpec((1, HID1), lambda k: (0, 0)),
            pl.BlockSpec((HID1, HID2), lambda k: (0, 0)),
            pl.BlockSpec((1, HID2), lambda k: (0, 0)),
            pl.BlockSpec((HID2, OUT_PAD), lambda k: (0, 0)),
            pl.BlockSpec((1, OUT_PAD), lambda k: (0, 0)),
        ],
        out_specs=pl.BlockSpec((B, OUT_PAD), lambda k: (0, 0)),
        scratch_shapes=[pltpu.VMEM((B, HID1), jnp.float32)],
    )
    flops = 2 * B * (C_PAD * FEAT_PAD + FEAT_PAD * HID1
                     + HID1 * HID2 + HID2 * OUT_PAD)
    trans = B * (FEAT_PAD + HID1 + HID2 + OUT_PAD)
    bytes_acc = (pooled.size * 2 + fcw.size * 2 + w1.size * 2 + w2.size * 2
                 + w3.size * 2
                 + (fcb.size + b1.size + b2.size + b3.size) * 4
                 + B * OUT_PAD * 4)
    return pl.pallas_call(
        _head_kernel,
        out_shape=jax.ShapeDtypeStruct((B, OUT_PAD), jnp.float32),
        grid_spec=grid_spec,
        compiler_params=pltpu.CompilerParams(
            dimension_semantics=("arbitrary",),
            vmem_limit_bytes=VMEM_LIMIT),
        cost_estimate=pl.CostEstimate(
            flops=flops, transcendentals=trans, bytes_accessed=bytes_acc),
    )(pooled, fcw, fcb, w1, b1, w2, b2, w3, b3)


# --------------------------------------------------------------------------
# Parameters (stand-in backbone + exact SELU/Linear/Sigmoid head), padded to
# lane-dense shapes with zeros so padded lanes are mathematically inert.
# --------------------------------------------------------------------------
def init_params(key):
    ks = jax.random.split(key, 10)

    def lin(kw, kb, fan_in, fan_out, pad_in, pad_out):
        w = jax.random.normal(kw, (fan_in, fan_out), jnp.float32) / jnp.sqrt(fan_in)
        b = 0.01 * jax.random.normal(kb, (fan_out,), jnp.float32)
        w = jnp.pad(w, ((0, pad_in - fan_in), (0, pad_out - fan_out)))
        b = jnp.pad(b, (0, pad_out - fan_out)).reshape(1, pad_out)
        return w.astype(jnp.bfloat16), b            # weights bf16, bias f32

    # Conv stem weight OIHW [64, 3, 7, 7] -> [CKK, 64] -> pad to [CKK_PAD, C_PAD]
    wc = (jax.random.normal(ks[0], (STEM_C, 3, STEM_K, STEM_K), jnp.float32)
          / jnp.sqrt(3.0 * STEM_K * STEM_K))
    wc_mat = jnp.pad(wc.reshape(STEM_C, CKK).T,
                     ((0, CKK_PAD - CKK), (0, C_PAD - STEM_C))).astype(jnp.bfloat16)
    bc = jnp.pad(0.01 * jax.random.normal(ks[1], (STEM_C,), jnp.float32),
                 (0, C_PAD - STEM_C)).reshape(1, C_PAD)

    fcw, fcb = lin(ks[2], ks[3], STEM_C, FEAT, C_PAD, FEAT_PAD)   # backbone FC
    w1, b1 = lin(ks[4], ks[5], FEAT, HID1, FEAT_PAD, HID1)        # Linear(1000,512)
    w2, b2 = lin(ks[6], ks[7], HID1, HID2, HID1, HID2)            # Linear(512,256)
    w3, b3 = lin(ks[8], ks[9], HID2, OUT, HID2, OUT_PAD)          # Linear(256,2)
    return (wc_mat, bc), (fcw, fcb, w1, b1, w2, b2, w3, b3)


# --------------------------------------------------------------------------
# Full forward pass.
# --------------------------------------------------------------------------
@jax.jit
def discriminator_forward(x, stem_params, head_params):
    # x: NCHW [B, 3, H, W]
    wc_mat, bc = stem_params
    B = x.shape[0]
    pad = STEM_K // 2

    # im2col (glue): patches [B, Cin*kh*kw, H', W'] with feature order (C, kh, kw)
    patches = jax.lax.conv_general_dilated_patches(
        x, filter_shape=(STEM_K, STEM_K),
        window_strides=(STEM_STRIDE, STEM_STRIDE),
        padding=((pad, pad), (pad, pad)),
        dimension_numbers=("NCHW", "OIHW", "NCHW"),
    )
    _, ckk, hp, wp = patches.shape
    hw = hp * wp
    patches = patches.transpose(0, 2, 3, 1).reshape(B, hw, ckk)

    # Row-tile the M axis (multiple of 8, capped at 512) and pad the
    # contraction to a lane-dense 256.
    tm = min(512, ((hw + 7) // 8) * 8)
    hw_pad = ((hw + tm - 1) // tm) * tm
    patches = jnp.pad(patches, ((0, 0), (0, hw_pad - hw), (0, CKK_PAD - ckk)))
    patches = patches.astype(jnp.bfloat16)

    pooled = conv_stem_gap(patches, wc_mat, bc, hw_valid=hw, tm=tm)  # [B,8,C_PAD]
    pooled = pooled[:, 0, :].astype(jnp.bfloat16)                    # [B, C_PAD]

    probs = head_forward(pooled, head_params)                        # [B, OUT_PAD]
    return probs[:, :OUT]                                            # [B, 2]


if __name__ == "__main__":
    key = jax.random.PRNGKey(0)
    k_x, k_p = jax.random.split(key)

    B, H, W = 2, 16, 16
    x = jax.random.normal(k_x, (B, 3, H, W), jnp.float32)   # NCHW like PyTorch

    stem_params, head_params = init_params(k_p)

    out = discriminator_forward(x, stem_params, head_params)
    out = jax.block_until_ready(out)

    assert out.shape == (B, OUT), out.shape
    # pl.reciprocal(approx=True) can deviate by ~2^-12; allow a tiny epsilon.
    assert bool(jnp.all(jnp.isfinite(out))), "non-finite output"
    assert bool(jnp.all((out >= -1e-3) & (out <= 1.0 + 1e-3))), "sigmoid range violated"
    print("KERNEL_OK")
</pallas_src>

<mosaic_0001>
module attributes {stable_mosaic.version = 11 : i64} {
  func.func @_stem_kernel(%arg0: i32, %arg1: i32, %arg2: memref<1x64x256xbf16, #tpu.memory_space<vmem>>, %arg3: memref<256x128xbf16, #tpu.memory_space<vmem>>, %arg4: memref<1x128xf32, #tpu.memory_space<vmem>>, %arg5: memref<1x8x128xf32, #tpu.memory_space<vmem>>, %arg6: memref<1x128xf32, #tpu.memory_space<vmem>>) attributes {dimension_semantics = [#tpu.dimension_semantics<parallel>, #tpu.dimension_semantics<arbitrary>], iteration_bounds = array<i64: 2, 1>, scalar_prefetch = 0 : i64, scratch_operands = 1 : i64, tpu.core_type = #tpu.core_type<tc>, window_params = [{transform_indices = @transform_0, window_bounds = array<i64: 1, 64, 256>}, {pipeline_mode = #tpu.pipeline_mode<synchronous>, transform_indices = @transform_1, window_bounds = array<i64: 256, 128>}, {pipeline_mode = #tpu.pipeline_mode<synchronous>, transform_indices = @transform_2, window_bounds = array<i64: 1, 128>}, {transform_indices = @transform_3, window_bounds = array<i64: 1, 8, 128>}]} {
    %c0_i32 = arith.constant 0 : i32
    %0 = arith.cmpi eq, %arg1, %c0_i32 : i32
    %1 = arith.extui %0 : i1 to i32
    %c0_i32_0 = arith.constant 0 : i32
    %2 = arith.cmpi ne, %1, %c0_i32_0 : i32
    scf.if %2 {
      %cst_15 = arith.constant 0.000000e+00 : f32
      %20 = vector.broadcast %cst_15 : f32 to vector<1x128xf32>
      %c0_16 = arith.constant 0 : index
      %c0_17 = arith.constant 0 : index
      %21 = vector.load %arg6[%c0_16, %c0_17] : memref<1x128xf32, #tpu.memory_space<vmem>>, vector<1x128xf32>
      tpu.vector_store %arg6[%c0_16, %c0_17], %20 {strides = array<i32>} : memref<1x128xf32, #tpu.memory_space<vmem>>, vector<1x128xf32>,
    } else {
    }
    %c0 = arith.constant 0 : index
    %c0_1 = arith.constant 0 : index
    %c0_2 = arith.constant 0 : index
    %3 = vector.load %arg2[%c0, %c0_1, %c0_2] : memref<1x64x256xbf16, #tpu.memory_space<vmem>>, vector<1x64x256xbf16>
    %4 = vector.shape_cast %3 : vector<1x64x256xbf16> to vector<64x256xbf16>
    %c0_3 = arith.constant 0 : index
    %c0_4 = arith.constant 0 : index
    %5 = vector.load %arg3[%c0_3, %c0_4] : memref<256x128xbf16, #tpu.memory_space<vmem>>, vector<256x128xbf16>
    %cst = arith.constant dense<0.000000e+00> : vector<64x128xf32>
    %6 = tpu.matmul %4, %5, %cst {dimension_numbers = #tpu.dot_dimension_numbers<[1], [0], [0], [1], [0, 0, 1, 1], [], []>} : vector<64x256xbf16>, vector<256x128xbf16>, vector<64x128xf32> -> vector<64x128xf32>
    %c0_5 = arith.constant 0 : index
    %c0_6 = arith.constant 0 : index
    %7 = vector.load %arg4[%c0_5, %c0_6] : memref<1x128xf32, #tpu.memory_space<vmem>>, vector<1x128xf32>
    %8 = vector.broadcast %7 : vector<1x128xf32> to vector<64x128xf32>
    %9 = arith.addf %6, %8 : vector<64x128xf32>
    %cst_7 = arith.constant 0.000000e+00 : f32
    %10 = vector.broadcast %cst_7 : f32 to vector<64x128xf32>
    %11 = arith.maximumf %9, %10 : vector<64x128xf32>
    %c0_8 = arith.constant 0 : index
    %c0_9 = arith.constant 0 : index
    %12 = vector.load %arg6[%c0_8, %c0_9] : memref<1x128xf32, #tpu.memory_space<vmem>>, vector<1x128xf32>
    %cst_10 = arith.constant dense<0.000000e+00> : vector<128xf32>
    %13 = vector.multi_reduction <add>, %11, %cst_10 [0] : vector<64x128xf32> to vector<128xf32>
    %14 = vector.shape_cast %13 : vector<128xf32> to vector<1x128xf32>
    %15 = arith.addf %12, %14 : vector<1x128xf32>
    %c0_11 = arith.constant 0 : index
    %c0_12 = arith.constant 0 : index
    %16 = vector.load %arg6[%c0_11, %c0_12] : memref<1x128xf32, #tpu.memory_space<vmem>>, vector<1x128xf32>
    tpu.vector_store %arg6[%c0_11, %c0_12], %15 {strides = array<i32>} : memref<1x128xf32, #tpu.memory_space<vmem>>, vector<1x128xf32>,
    %c0_i32_13 = arith.constant 0 : i32
    %17 = arith.cmpi eq, %arg1, %c0_i32_13 : i32
    %18 = arith.extui %17 : i1 to i32
    %c0_i32_14 = arith.constant 0 : i32
    %19 = arith.cmpi ne, %18, %c0_i32_14 : i32
    scf.if %19 {
      %c0_15 = arith.constant 0 : index
      %c0_16 = arith.constant 0 : index
      %20 = vector.load %arg6[%c0_15, %c0_16] : memref<1x128xf32, #tpu.memory_space<vmem>>, vector<1x128xf32>
      %cst_17 = arith.constant 1.562500e-02 : f32
      %21 = vector.broadcast %cst_17 : f32 to vector<1x128xf32>
      %22 = arith.mulf %20, %21 : vector<1x128xf32>
      %23 = vector.shape_cast %22 : vector<1x128xf32> to vector<1x1x128xf32>
      %24 = vector.shape_cast %23 : vector<1x1x128xf32> to vector<1x1x128xf32>
      %25 = vector.broadcast %24 : vector<1x1x128xf32> to vector<1x8x128xf32>
      %c0_18 = arith.constant 0 : index
      %c0_19 = arith.constant 0 : index
      %c0_20 = arith.constant 0 : index
      %26 = vector.load %arg5[%c0_18, %c0_19, %c0_20] : memref<1x8x128xf32, #tpu.memory_space<vmem>>, vector<1x8x128xf32>
      tpu.vector_store %arg5[%c0_18, %c0_19, %c0_20], %25 {strides = array<i32>} : memref<1x8x128xf32, #tpu.memory_space<vmem>>, vector<1x8x128xf32>,
    } else {
    }
    return
  }
  func.func @transform_0(%arg0: i32, %arg1: i32) -> (i32, i32, i32) {
    %c0_i32 = arith.constant 0 : i32
    %c0_i32_0 = arith.constant 0 : i32
    return %arg0, %arg1, %c0_i32 : i32, i32, i32
  }
  func.func @transform_1(%arg0: i32, %arg1: i32) -> (i32, i32) {
    %c0_i32 = arith.constant 0 : i32
    %c0_i32_0 = arith.constant 0 : i32
    %c0_i32_1 = arith.constant 0 : i32
    return %c0_i32, %c0_i32_0 : i32, i32
  }
  func.func @transform_2(%arg0: i32, %arg1: i32) -> (i32, i32) {
    %c0_i32 = arith.constant 0 : i32
    %c0_i32_0 = arith.constant 0 : i32
    %c0_i32_1 = arith.constant 0 : i32
    return %c0_i32, %c0_i32_0 : i32, i32
  }
  func.func @transform_3(%arg0: i32, %arg1: i32) -> (i32, i32, i32) {
    %c0_i32 = arith.constant 0 : i32
    %c0_i32_0 = arith.constant 0 : i32
    %c0_i32_1 = arith.constant 0 : i32
    return %arg0, %c0_i32, %c0_i32_0 : i32, i32, i32
  }
}

module attributes {stable_mosaic.version = 11 : i64} {
  func.func @_head_kernel(%arg0: i32, %arg1: memref<2x128xbf16, #tpu.memory_space<vmem>>, %arg2: memref<128x256xbf16, #tpu.memory_space<vmem>>, %arg3: memref<1x256xf32, #tpu.memory_space<vmem>>, %arg4: memref<256x512xbf16, #tpu.memory_space<vmem>>, %arg5: memref<1x512xf32, #tpu.memory_space<vmem>>, %arg6: memref<512x256xbf16, #tpu.memory_space<vmem>>, %arg7: memref<1x256xf32, #tpu.memory_space<vmem>>, %arg8: memref<256x128xbf16, #tpu.memory_space<vmem>>, %arg9: memref<1x128xf32, #tpu.memory_space<vmem>>, %arg10: memref<2x128xf32, #tpu.memory_space<vmem>>, %arg11: memref<2x512xf32, #tpu.memory_space<vmem>>) attributes {dimension_semantics = [#tpu.dimension_semantics<arbitrary>], iteration_bounds = array<i64: 4>, scalar_prefetch = 0 : i64, scratch_operands = 1 : i64, tpu.core_type = #tpu.core_type<tc>, window_params = [{pipeline_mode = #tpu.pipeline_mode<synchronous>, transform_indices = @transform_0, window_bounds = array<i64: 2, 128>}, {transform_indices = @transform_1, window_bounds = array<i64: 128, 256>}, {transform_indices = @transform_2, window_bounds = array<i64: 1, 256>}, {transform_indices = @transform_3, window_bounds = array<i64: 256, 512>}, {pipeline_mode = #tpu.pipeline_mode<synchronous>, transform_indices = @transform_4, window_bounds = array<i64: 1, 512>}, {pipeline_mode = #tpu.pipeline_mode<synchronous>, transform_indices = @transform_5, window_bounds = array<i64: 512, 256>}, {pipeline_mode = #tpu.pipeline_mode<synchronous>, transform_indices = @transform_6, window_bounds = array<i64: 1, 256>}, {pipeline_mode = #tpu.pipeline_mode<synchronous>, transform_indices = @transform_7, window_bounds = array<i64: 256, 128>}, {pipeline_mode = #tpu.pipeline_mode<synchronous>, transform_indices = @transform_8, window_bounds = array<i64: 1, 128>}, {pipeline_mode = #tpu.pipeline_mode<synchronous>, transform_indices = @transform_9, window_bounds = array<i64: 2, 128>}]} {
    %c0_i32 = arith.constant 0 : i32
    %0 = arith.cmpi eq, %arg0, %c0_i32 : i32
    %1 = arith.extui %0 : i1 to i32
    %c0_i32_0 = arith.constant 0 : i32
    %2 = arith.cmpi ne, %1, %c0_i32_0 : i32
    scf.if %2 {
      %cst_18 = arith.constant 0.000000e+00 : f32
      %28 = vector.broadcast %cst_18 : f32 to vector<2x512xf32>
      %c0_19 = arith.constant 0 : index
      %c0_20 = arith.constant 0 : index
      %29 = vector.load %arg11[%c0_19, %c0_20] : memref<2x512xf32, #tpu.memory_space<vmem>>, vector<2x512xf32>
      tpu.vector_store %arg11[%c0_19, %c0_20], %28 {strides = array<i32>} : memref<2x512xf32, #tpu.memory_space<vmem>>, vector<2x512xf32>,
    } else {
    }
    %c0 = arith.constant 0 : index
    %c0_1 = arith.constant 0 : index
    %3 = vector.load %arg1[%c0, %c0_1] : memref<2x128xbf16, #tpu.memory_space<vmem>>, vector<2x128xbf16>
    %c0_2 = arith.constant 0 : index
    %c0_3 = arith.constant 0 : index
    %4 = vector.load %arg2[%c0_2, %c0_3] : memref<128x256xbf16, #tpu.memory_space<vmem>>, vector<128x256xbf16>
    %cst = arith.constant dense<0.000000e+00> : vector<2x256xf32>
    %5 = tpu.matmul %3, %4, %cst {dimension_numbers = #tpu.dot_dimension_numbers<[1], [0], [0], [1], [0, 0, 1, 1], [], []>} : vector<2x128xbf16>, vector<128x256xbf16>, vector<2x256xf32> -> vector<2x256xf32>
    %c0_4 = arith.constant 0 : index
    %c0_5 = arith.constant 0 : index
    %6 = vector.load %arg3[%c0_4, %c0_5] : memref<1x256xf32, #tpu.memory_space<vmem>>, vector<1x256xf32>
    %7 = vector.broadcast %6 : vector<1x256xf32> to vector<2x256xf32>
    %8 = arith.addf %5, %7 : vector<2x256xf32>
    %cst_6 = arith.constant 0.000000e+00 : f32
    %9 = vector.broadcast %cst_6 : f32 to vector<2x256xf32>
    %10 = arith.cmpf ogt, %8, %9 : vector<2x256xf32>
    %11 = math.exp %8 : vector<2x256xf32>
    %cst_7 = arith.constant 1.000000e+00 : f32
    %12 = vector.broadcast %cst_7 : f32 to vector<2x256xf32>
    %13 = arith.subf %11, %12 : vector<2x256xf32>
    %cst_8 = arith.constant 1.67326319 : f32
    %14 = vector.broadcast %cst_8 : f32 to vector<2x256xf32>
    %15 = arith.mulf %14, %13 : vector<2x256xf32>
    %16 = arith.select %10, %8, %15 : vector<2x256xi1>, vector<2x256xf32>
    %cst_9 = arith.constant 1.05070102 : f32
    %17 = vector.broadcast %cst_9 : f32 to vector<2x256xf32>
    %18 = arith.mulf %17, %16 : vector<2x256xf32>
    %19 = arith.truncf %18 : vector<2x256xf32> to vector<2x256xbf16>
    %c0_10 = arith.constant 0 : index
    %c0_11 = arith.constant 0 : index
    %20 = vector.load %arg11[%c0_10, %c0_11] : memref<2x512xf32, #tpu.memory_space<vmem>>, vector<2x512xf32>
    %c0_12 = arith.constant 0 : index
    %c0_13 = arith.constant 0 : index
    %21 = vector.load %arg4[%c0_12, %c0_13] : memref<256x512xbf16, #tpu.memory_space<vmem>>, vector<256x512xbf16>
    %cst_14 = arith.constant dense<0.000000e+00> : vector<2x512xf32>
    %22 = tpu.matmul %19, %21, %cst_14 {dimension_numbers = #tpu.dot_dimension_numbers<[1], [0], [0], [1], [0, 0, 1, 1], [], []>} : vector<2x256xbf16>, vector<256x512xbf16>, vector<2x512xf32> -> vector<2x512xf32>
    %23 = arith.addf %20, %22 : vector<2x512xf32>
    %c0_15 = arith.constant 0 : index
    %c0_16 = arith.constant 0 : index
    %24 = vector.load %arg11[%c0_15, %c0_16] : memref<2x512xf32, #tpu.memory_space<vmem>>, vector<2x512xf32>
    tpu.vector_store %arg11[%c0_15, %c0_16], %23 {strides = array<i32>} : memref<2x512xf32, #tpu.memory_space<vmem>>, vector<2x512xf32>,
    %c3_i32 = arith.constant 3 : i32
    %25 = arith.cmpi eq, %arg0, %c3_i32 : i32
    %26 = arith.extui %25 : i1 to i32
    %c0_i32_17 = arith.constant 0 : i32
    %27 = arith.cmpi ne, %26, %c0_i32_17 : i32
    scf.if %27 {
      %c0_18 = arith.constant 0 : index
      %c0_19 = arith.constant 0 : index
      %28 = vector.load %arg11[%c0_18, %c0_19] : memref<2x512xf32, #tpu.memory_space<vmem>>, vector<2x512xf32>
      %c0_20 = arith.constant 0 : index
      %c0_21 = arith.constant 0 : index
      %29 = vector.load %arg5[%c0_20, %c0_21] : memref<1x512xf32, #tpu.memory_space<vmem>>, vector<1x512xf32>
      %30 = vector.broadcast %29 : vector<1x512xf32> to vector<2x512xf32>
      %31 = arith.addf %28, %30 : vector<2x512xf32>
      %cst_22 = arith.constant 0.000000e+00 : f32
      %32 = vector.broadcast %cst_22 : f32 to vector<2x512xf32>
      %33 = arith.cmpf ogt, %31, %32 : vector<2x512xf32>
      %34 = math.exp %31 : vector<2x512xf32>
      %cst_23 = arith.constant 1.000000e+00 : f32
      %35 = vector.broadcast %cst_23 : f32 to vector<2x512xf32>
      %36 = arith.subf %34, %35 : vector<2x512xf32>
      %cst_24 = arith.constant 1.67326319 : f32
      %37 = vector.broadcast %cst_24 : f32 to vector<2x512xf32>
      %38 = arith.mulf %37, %36 : vector<2x512xf32>
      %39 = arith.select %33, %31, %38 : vector<2x512xi1>, vector<2x512xf32>
      %cst_25 = arith.constant 1.05070102 : f32
      %40 = vector.broadcast %cst_25 : f32 to vector<2x512xf32>
      %41 = arith.mulf %40, %39 : vector<2x512xf32>
      %42 = arith.truncf %41 : vector<2x512xf32> to vector<2x512xbf16>
      %c0_26 = arith.constant 0 : index
      %c0_27 = arith.constant 0 : index
      %43 = vector.load %arg6[%c0_26, %c0_27] : memref<512x256xbf16, #tpu.memory_space<vmem>>, vector<512x256xbf16>
      %cst_28 = arith.constant dense<0.000000e+00> : vector<2x256xf32>
      %44 = tpu.matmul %42, %43, %cst_28 {dimension_numbers = #tpu.dot_dimension_numbers<[1], [0], [0], [1], [0, 0, 1, 1], [], []>} : vector<2x512xbf16>, vector<512x256xbf16>, vector<2x256xf32> -> vector<2x256xf32>
      %c0_29 = arith.constant 0 : index
      %c0_30 = arith.constant 0 : index
      %45 = vector.load %arg7[%c0_29, %c0_30] : memref<1x256xf32, #tpu.memory_space<vmem>>, vector<1x256xf32>
      %46 = vector.broadcast %45 : vector<1x256xf32> to vector<2x256xf32>
      %47 = arith.addf %44, %46 : vector<2x256xf32>
      %cst_31 = arith.constant 0.000000e+00 : f32
      %48 = vector.broadcast %cst_31 : f32 to vector<2x256xf32>
      %49 = arith.cmpf ogt, %47, %48 : vector<2x256xf32>
      %50 = math.exp %47 : vector<2x256xf32>
      %cst_32 = arith.constant 1.000000e+00 : f32
      %51 = vector.broadcast %cst_32 : f32 to vector<2x256xf32>
      %52 = arith.subf %50, %51 : vector<2x256xf32>
      %cst_33 = arith.constant 1.67326319 : f32
      %53 = vector.broadcast %cst_33 : f32 to vector<2x256xf32>
      %54 = arith.mulf %53, %52 : vector<2x256xf32>
      %55 = arith.select %49, %47, %54 : vector<2x256xi1>, vector<2x256xf32>
      %cst_34 = arith.constant 1.05070102 : f32
      %56 = vector.broadcast %cst_34 : f32 to vector<2x256xf32>
      %57 = arith.mulf %56, %55 : vector<2x256xf32>
      %58 = arith.truncf %57 : vector<2x256xf32> to vector<2x256xbf16>
      %c0_35 = arith.constant 0 : index
      %c0_36 = arith.constant 0 : index
      %59 = vector.load %arg8[%c0_35, %c0_36] : memref<256x128xbf16, #tpu.memory_space<vmem>>, vector<256x128xbf16>
      %cst_37 = arith.constant dense<0.000000e+00> : vector<2x128xf32>
      %60 = tpu.matmul %58, %59, %cst_37 {dimension_numbers = #tpu.dot_dimension_numbers<[1], [0], [0], [1], [0, 0, 1, 1], [], []>} : vector<2x256xbf16>, vector<256x128xbf16>, vector<2x128xf32> -> vector<2x128xf32>
      %c0_38 = arith.constant 0 : index
      %c0_39 = arith.constant 0 : index
      %61 = vector.load %arg9[%c0_38, %c0_39] : memref<1x128xf32, #tpu.memory_space<vmem>>, vector<1x128xf32>
      %62 = vector.broadcast %61 : vector<1x128xf32> to vector<2x128xf32>
      %63 = arith.addf %60, %62 : vector<2x128xf32>
      %cst_40 = arith.constant 0.000000e+00 : f32
      %64 = vector.broadcast %cst_40 : f32 to vector<2x128xf32>
      %65 = arith.subf %64, %63 : vector<2x128xf32>
      %66 = math.exp %65 : vector<2x128xf32>
      %cst_41 = arith.constant 1.000000e+00 : f32
      %67 = vector.broadcast %cst_41 : f32 to vector<2x128xf32>
      %68 = arith.addf %67, %66 : vector<2x128xf32>
      %69 = tpu.reciprocal %68 {approx = true} : vector<2x128xf32> -> vector<2x128xf32>
      %c0_42 = arith.constant 0 : index
      %c0_43 = arith.constant 0 : index
      %70 = vector.load %arg10[%c0_42, %c0_43] : memref<2x128xf32, #tpu.memory_space<vmem>>, vector<2x128xf32>
      tpu.vector_store %arg10[%c0_42, %c0_43], %69 {strides = array<i32>} : memref<2x128xf32, #tpu.memory_space<vmem>>, vector<2x128xf32>,
    } else {
    }
    return
  }
  func.func @transform_0(%arg0: i32) -> (i32, i32) {
    %c0_i32 = arith.constant 0 : i32
    %c0_i32_0 = arith.constant 0 : i32
    %c0_i32_1 = arith.constant 0 : i32
    return %c0_i32, %c0_i32_0 : i32, i32
  }
  func.func @transform_1(%arg0: i32) -> (i32, i32) {
    %c0_i32 = arith.constant 0 : i32
    %c0_i32_0 = arith.constant 0 : i32
    return %c0_i32, %arg0 : i32, i32
  }
  func.func @transform_2(%arg0: i32) -> (i32, i32) {
    %c0_i32 = arith.constant 0 : i32
    %c0_i32_0 = arith.constant 0 : i32
    return %c0_i32, %arg0 : i32, i32
  }
  func.func @transform_3(%arg0: i32) -> (i32, i32) {
    %c0_i32 = arith.constant 0 : i32
    %c0_i32_0 = arith.constant 0 : i32
    return %arg0, %c0_i32 : i32, i32
  }
  func.func @transform_4(%arg0: i32) -> (i32, i32) {
    %c0_i32 = arith.constant 0 : i32
    %c0_i32_0 = arith.constant 0 : i32
    %c0_i32_1 = arith.constant 0 : i32
    return %c0_i32, %c0_i32_0 : i32, i32
  }
  func.func @transform_5(%arg0: i32) -> (i32, i32) {
    %c0_i32 = arith.constant 0 : i32
    %c0_i32_0 = arith.constant 0 : i32
    %c0_i32_1 = arith.constant 0 : i32
    return %c0_i32, %c0_i32_0 : i32, i32
  }
  func.func @transform_6(%arg0: i32) -> (i32, i32) {
    %c0_i32 = arith.constant 0 : i32
    %c0_i32_0 = arith.constant 0 : i32
    %c0_i32_1 = arith.constant 0 : i32
    return %c0_i32, %c0_i32_0 : i32, i32
  }
  func.func @transform_7(%arg0: i32) -> (i32, i32) {
    %c0_i32 = arith.constant 0 : i32
    %c0_i32_0 = arith.constant 0 : i32
    %c0_i32_1 = arith.constant 0 : i32
    return %c0_i32, %c0_i32_0 : i32, i32
  }
  func.func @transform_8(%arg0: i32) -> (i32, i32) {
    %c0_i32 = arith.constant 0 : i32
    %c0_i32_0 = arith.constant 0 : i32
    %c0_i32_1 = arith.constant 0 : i32
    return %c0_i32, %c0_i32_0 : i32, i32
  }
  func.func @transform_9(%arg0: i32) -> (i32, i32) {
    %c0_i32 = arith.constant 0 : i32
    %c0_i32_0 = arith.constant 0 : i32
    %c0_i32_1 = arith.constant 0 : i32
    return %c0_i32, %c0_i32_0 : i32, i32
  }
}

</mosaic_0001>

<llo_original>
// kernel: discriminator_forward.2
$region0: #{discriminator_forward.2}
  #allocation0 [shape = 'u32[]', space=smem, size = 0x4, offset = 0x4, fixed_abs, tag = 'smem constant byte address 0x4 - core index']
  #allocation1 [shape = 'u32[144,128]{1,0:T(1,128)}', space=vmem, size = 0x12000, scoped, tag = 'internal scratch']
  #allocation2 [shape = 'f32[1,128]{1,0:T(1,128)}', space=vmem, size = 0x200, scoped, tag = 'scratch operand']
  %s0 = inlined_call_operand.vmem [shape: bf16[2,64,256], index: 0, kind: input, shape index: {}]
  %s1 = inlined_call_operand.hbm [shape: bf16[256,128], index: 1, kind: input, shape index: {}]
  %s2 = inlined_call_operand.hbm [shape: f32[1,128], index: 2, kind: input, shape index: {}]
  %s3 = inlined_call_operand.vmem [shape: f32[2,8,128], index: 3, kind: output, shape index: {}]
  %s4 = sld [smem:[#allocation0]]
  $region61: #{discriminator_forward.2} parent=0
    _
  %s6 = ssub.s32 1, %s4
  %s7 = scalar_select 0, %s6, %s4
  $region1: #{discriminator_forward.2} parent=0
    #allocation3 [shape = 'u8[65536]{0}', space=vmem, size = 0x10000, scoped, tag = 'input window, operand 1, single buffered']
    #allocation4 [shape = 's32[2]{0}', space=sflag, size = 0x8, scoped, tag = 'scoped memory for discriminator_forward.2']
    #allocation5 [shape = 'u8[512]{0}', space=vmem, size = 0x400, scoped, tag = 'input window, operand 2, single buffered']
    #allocation6 [shape = 's32[1]{0}', space=sflag, size = 0x4, scoped, tag = 'scoped memory for discriminator_forward.2']
    %8 = vsyncpa [#allocation4], 0
    %9 = vsyncpa [#allocation6], 0
    loop: start=0, step=1, limit=4
    $region2: #{discriminator_forward.2} parent=1 // loop_pre_header
      _
    $region3: #{discriminator_forward.2} parent=1 // loop_header
      %s11 = sphi 0, %s15
      %p12 = scmp.ge.s32.totalorder %s11, 4
      %s18 = sphi 0, %s30
      %s19 = sphi 0, %s26
      %s20 = sphi 0, %s18
      %s21 = sphi 0, %s19
      %s22 = sphi 0, %s20
      %s23 = sphi 0, %s21
      %s35 = sphi 0, %s37
      %s38 = sphi 0, %s35
      %s39 = sphi 0, %s38
      %s55 = sphi 0, %s39
      %s59 = sphi 0, %s59
      %s61 = sphi 0, %s59
      %s62 = sphi 0, %s61
      %s76 = sphi 0, %s62
      %s80 = sphi 0, %s80
      %s82 = sphi 0, %s80
      %s83 = sphi 0, %s82
      %s97 = sphi 0, %s83
      %s103 = sphi 0, %s105
      %s106 = sphi 0, %s103
      %s107 = sphi 0, %s106
      %s123 = sphi 0, %s107
    $region4: #{discriminator_forward.2} parent=1 // loop_header_branch
      %14 = sbr.rel (%p12) target = $region8
    $region5: #{discriminator_forward.2} parent=1 // loop_body
      %s16 = ssub.s32 %s11, 1
      %s17 = ssub.s32 %s11, 2
      %s24 = sadd.s32 1, %s19
      %p25 = scmp.ge.s32.totalorder %s24, 1
      %s26 = scalar_select %p25, 0, %s24
      %s27 = sadd.s32 1, %s18
      %s28 = scalar_select %p25, %s27, %s18
      %p29 = scmp.ge.s32.totalorder %s28, 2
      %s30 = scalar_select %p29, 0, %s28
      %s31 = ssub.s32 %s18, %s30
      %s32 = ssub.s32 %s19, %s26
      %s33 = sor.u32 %s31, %s32
      %p34 = scmp.eq.s32.totalorder %s33, 0
      %s36 = sadd.s32 %s35, 1
      %s37 = scalar_select %p34, %s35, %s36
      %p40 = pneg %p34
      %p41 = scmp.eq.s32.totalorder %s11, 1
      %p42 = por %p40, %p41
      %p43 = scmp.ne.s32.totalorder %s35, %s38
      %p44 = scmp.eq.s32.totalorder %s11, 0
      %p45 = por %p43, %p44
      %p46 = scmp.ne.s32.totalorder %s35, %s38
      %p47 = scmp.eq.s32.totalorder %s16, 1
      %p48 = por %p46, %p47
      %p49 = scmp.ne.s32.totalorder %s38, %s39
      %p50 = scmp.eq.s32.totalorder %s16, 0
      %p51 = por %p49, %p50
      %p52 = scmp.ne.s32.totalorder %s38, %s39
      %p53 = scmp.eq.s32.totalorder %s17, 1
      %p54 = por %p52, %p53
      %p56 = scmp.ne.s32.totalorder %s39, %s55
      %p57 = scmp.eq.s32.totalorder %s17, 0
      %p58 = por %p56, %p57
      %s60 = sadd.s32 %s59, 1
      %p63 = scmp.eq.s32.totalorder %s11, 1
      %p64 = scmp.ne.s32.totalorder %s59, %s61
      %p65 = scmp.eq.s32.totalorder %s11, 0
      %p66 = por %p64, %p65
      %p67 = scmp.ne.s32.totalorder %s59, %s61
      %p68 = scmp.eq.s32.totalorder %s16, 1
      %p69 = por %p67, %p68
      %p70 = scmp.ne.s32.totalorder %s61, %s62
      %p71 = scmp.eq.s32.totalorder %s16, 0
      %p72 = por %p70, %p71
      %p73 = scmp.ne.s32.totalorder %s61, %s62
      %p74 = scmp.eq.s32.totalorder %s17, 1
      %p75 = por %p73, %p74
      %p77 = scmp.ne.s32.totalorder %s62, %s76
      %p78 = scmp.eq.s32.totalorder %s17, 0
      %p79 = por %p77, %p78
      %s81 = sadd.s32 %s80, 1
      %p84 = scmp.eq.s32.totalorder %s11, 1
      %p85 = scmp.ne.s32.totalorder %s80, %s82
      %p86 = scmp.eq.s32.totalorder %s11, 0
      %p87 = por %p85, %p86
      %p88 = scmp.ne.s32.totalorder %s80, %s82
      %p89 = scmp.eq.s32.totalorder %s16, 1
      %p90 = por %p88, %p89
      %p91 = scmp.ne.s32.totalorder %s82, %s83
      %p92 = scmp.eq.s32.totalorder %s16, 0
      %p93 = por %p91, %p92
      %p94 = scmp.ne.s32.totalorder %s82, %s83
      %p95 = scmp.eq.s32.totalorder %s17, 1
      %p96 = por %p94, %p95
      %p98 = scmp.ne.s32.totalorder %s83, %s97
      %p99 = scmp.eq.s32.totalorder %s17, 0
      %p100 = por %p98, %p99
      %s101 = ssub.s32 %s18, %s30
      %p102 = scmp.eq.s32.totalorder %s101, 0
      %s104 = sadd.s32 %s103, 1
      %s105 = scalar_select %p102, %s103, %s104
      %p108 = pneg %p102
      %p109 = scmp.eq.s32.totalorder %s11, 1
      %p110 = por %p108, %p109
      %p111 = scmp.ne.s32.totalorder %s103, %s106
      %p112 = scmp.eq.s32.totalorder %s11, 0
      %p113 = por %p111, %p112
      %p114 = scmp.ne.s32.totalorder %s103, %s106
      %p115 = scmp.eq.s32.totalorder %s16, 1
      %p116 = por %p114, %p115
      %p117 = scmp.ne.s32.totalorder %s106, %s107
      %p118 = scmp.eq.s32.totalorder %s16, 0
      %p119 = por %p117, %p118
      %p120 = scmp.ne.s32.totalorder %s106, %s107
      %p121 = scmp.eq.s32.totalorder %s17, 1
      %p122 = por %p120, %p121
      %p124 = scmp.ne.s32.totalorder %s107, %s123
      %p125 = scmp.eq.s32.totalorder %s17, 0
      %p126 = por %p124, %p125
      %p127 = scmp.le.s32.totalorder 1, %s11
      %p128 = scmp.lt.s32.totalorder %s11, 3
      %p129 = pnand %p127, %p128
      %p130 = pneg %p129
      // Predicated region
      $region9: #{discriminator_forward.2} parent=5 // pred_check
        _
      $region10: #{discriminator_forward.2} parent=5 // pred_check_branch
        %132 = sbr.rel (%p129) target = $region12
      $region11: #{discriminator_forward.2} parent=5 // pred_region
        %s133 = ssub.s32 %s11, 1
        // Predicated region
        $region13: #{discriminator_forward.2} parent=11 // pred_check
          %p134 = pneg %p72
        $region14: #{discriminator_forward.2} parent=11 // pred_check_branch
          %136 = sbr.rel (%p134) target = $region16
        $region15: #{discriminator_forward.2} parent=11 // pred_region
          %s138 = ssub.s32 2048, 2048
          %139 = vsyncadd [#allocation4], %s138
          %s140 = sshll.u32 [#allocation3], 4
          %s141 = int_to_ptr.vmem [resolvable:$true] %s140
          %146 = dma.hbm_to_vmem [thread:$0]  %s1, 2048, %s141, [#allocation4], 64, 64, 4
        $region16: #{discriminator_forward.2} parent=11 // pred_fallthru
          _
        // Predicated region
        $region17: #{discriminator_forward.2} parent=11 // pred_check
          %p147 = pneg %p93
        $region18: #{discriminator_forward.2} parent=11 // pred_check_branch
          %149 = sbr.rel (%p147) target = $region20
        $region19: #{discriminator_forward.2} parent=11 // pred_region
          %s151 = ssub.s32 16, 16
          %152 = vsyncadd [#allocation6], %s151
          %s154 = sshll.u32 [#allocation5], 4
          %s155 = int_to_ptr.vmem [resolvable:$true] %s154
          %157 = dma.hbm_to_vmem [thread:$0]  %s2, 16, %s155, [#allocation6]
        $region20: #{discriminator_forward.2} parent=11 // pred_fallthru
          _
      $region12: #{discriminator_forward.2} parent=5 // pred_fallthru
        _
      %p158 = scmp.lt.s32.totalorder %s11, 2
      // Predicated region
      $region21: #{discriminator_forward.2} parent=5 // pred_check
        %p159 = pneg %p158
      $region22: #{discriminator_forward.2} parent=5 // pred_check_branch
        %161 = sbr.rel (%p159) target = $region24
      $region23: #{discriminator_forward.2} parent=5 // pred_region
        // Predicated region
        $region25: #{discriminator_forward.2} parent=23 // pred_check
          %p162 = pneg %p45
        $region26: #{discriminator_forward.2} parent=23 // pred_check_branch
          %164 = sbr.rel (%p162) target = $region28
        $region27: #{discriminator_forward.2} parent=23 // pred_region
          %s165 = smul.u32 8, %s19
          %p166 = scmp.lt.s32.totalorder %s18, 1
          %s167 = scalar_select %p166, %s18, 1
          %p168 = scmp.lt.s32.totalorder %s165, 7
          %s169 = scalar_select %p168, %s165, 7
          %s170 = smul.addr %s169, 2
          %s171 = smul.addr %s167, 16
          %s172 = sadd.s32 %s170, %s171
          %s173 = smul.addr %s172, 4
          %s174 = scalar_lea.vmem %s0, %s173
          %s175 = smul.u32 8, %s19
        $region28: #{discriminator_forward.2} parent=23 // pred_fallthru
          _
      $region24: #{discriminator_forward.2} parent=5 // pred_fallthru
        _
      %p176 = scmp.le.s32.totalorder 1, %s11
      %p177 = scmp.lt.s32.totalorder %s11, 3
      %p178 = pnand %p176, %p177
      %p179 = pneg %p178
      // Predicated region
      $region29: #{discriminator_forward.2} parent=5 // pred_check
        _
      $region30: #{discriminator_forward.2} parent=5 // pred_check_branch
        %181 = sbr.rel (%p178) target = $region32
      $region31: #{discriminator_forward.2} parent=5 // pred_region
        %s182 = ssub.s32 %s11, 1
        // Predicated region
        $region33: #{discriminator_forward.2} parent=31 // pred_check
          %p183 = pneg %p72
        $region34: #{discriminator_forward.2} parent=31 // pred_check_branch
          %185 = sbr.rel (%p183) target = $region36
        $region35: #{discriminator_forward.2} parent=31 // pred_region
          %186 = dma.done [#allocation4], 2048
        $region36: #{discriminator_forward.2} parent=31 // pred_fallthru
          _
        // Predicated region
        $region37: #{discriminator_forward.2} parent=31 // pred_check
          %p187 = pneg %p93
        $region38: #{discriminator_forward.2} parent=31 // pred_check_branch
          %189 = sbr.rel (%p187) target = $region40
        $region39: #{discriminator_forward.2} parent=31 // pred_region
          %190 = dma.done [#allocation6], 16
        $region40: #{discriminator_forward.2} parent=31 // pred_fallthru
          _
        %s191 = smul.u32 8, %s21
        %p192 = scmp.lt.s32.totalorder %s20, 1
        %s193 = scalar_select %p192, %s20, 1
        %p194 = scmp.lt.s32.totalorder %s191, 7
        %s195 = scalar_select %p194, %s191, 7
        %s196 = smul.addr %s195, 2
        %s197 = smul.addr %s193, 16
        %s198 = sadd.s32 %s196, %s197
        %s199 = smul.addr %s198, 4
        %s200 = scalar_lea.vmem %s0, %s199
        %p201 = pneg %p51
        %p202 = pneg %p48
        %p203 = pneg %p72
        %p204 = pneg %p69
        %p205 = pneg %p93
        %p206 = pneg %p90
        %p207 = pneg %p119
        %p208 = pneg %p116
        %p209 = scmp.lt.s32.totalorder %s20, 1
        %s210 = scalar_select %p209, %s20, 1
        %s211 = smul.addr %s210, 8
        %s212 = scalar_lea.vmem %s3, %s211
        %s213 = smul.u32 8, %s21
        %p214 = scmp.lt.s32.totalorder %s20, 1
        %s215 = scalar_select %p214, %s20, 1
        %p216 = scmp.lt.s32.totalorder %s213, 7
        %s217 = scalar_select %p216, %s213, 7
        %s218 = smul.addr %s217, 2
        %s219 = smul.addr %s215, 16
        %s220 = sadd.s32 %s218, %s219
        %s221 = smul.addr %s220, 4
        %s222 = scalar_lea.vmem %s0, %s221
        %s223 = smul.u32 8, %s21
        %p224 = scmp.lt.s32.totalorder %s20, 1
        %s225 = scalar_select %p224, %s20, 1
        %s226 = smul.addr %s225, 8
        %s227 = scalar_lea.vmem %s3, %s226
        %p229 = scmp.eq.s32.totalorder %s21, 0
        // Predicated region
        $region41: #{discriminator_forward.2} parent=31 // pred_check
          %p230 = pneg %p229
        $region42: #{discriminator_forward.2} parent=31 // pred_check_branch
          %232 = sbr.rel (%p230) target = $region44
        $region43: #{discriminator_forward.2} parent=31 // pred_region
          %233 = vst [vmem:[#allocation2] sm:$0x1] 0.0
        $region44: #{discriminator_forward.2} parent=31 // pred_fallthru
          _
        %v234 = vld [vmem:[%s222] sm:$0xff]
        %v235 = vld [vmem:[%s222 + $0x8] sm:$0xff]
        %v236 = vld [vmem:[%s222 + $0x10] sm:$0xff]
        %v237 = vld [vmem:[%s222 + $0x18] sm:$0xff]
        %v238 = vld [vmem:[%s222 + $0x20] sm:$0xff]
        %v239 = vld [vmem:[%s222 + $0x28] sm:$0xff]
        %v240 = vld [vmem:[%s222 + $0x30] sm:$0xff]
        %v241 = vld [vmem:[%s222 + $0x38] sm:$0xff]
        %v242 = vld [vmem:[#allocation3] sm:$0xf]
        %v243 = vld [vmem:[#allocation3 + $0x4] sm:$0xf]
        %v244 = vld [vmem:[#allocation3 + $0x8] sm:$0xf]
        %v245 = vld [vmem:[#allocation3 + $0xc] sm:$0xf]
        %v246 = vld [vmem:[#allocation3 + $0x10] sm:$0xf]
        %v247 = vld [vmem:[#allocation3 + $0x14] sm:$0xf]
        %v248 = vld [vmem:[#allocation3 + $0x18] sm:$0xf]
        %v249 = vld [vmem:[#allocation3 + $0x1c] sm:$0xf]
        %v250 = vld [vmem:[#allocation3 + $0x20] sm:$0xf]
        %v251 = vld [vmem:[#allocation3 + $0x24] sm:$0xf]
        %v252 = vld [vmem:[#allocation3 + $0x28] sm:$0xf]
        %v253 = vld [vmem:[#allocation3 + $0x2c] sm:$0xf]
        %v254 = vld [vmem:[#allocation3 + $0x30] sm:$0xf]
        %v255 = vld [vmem:[#allocation3 + $0x34] sm:$0xf]
        %v256 = vld [vmem:[#allocation3 + $0x38] sm:$0xf]
        %v257 = vld [vmem:[#allocation3 + $0x3c] sm:$0xf]
        %v258 = vld [vmem:[#allocation3 + $0x40] sm:$0xf]
        %v259 = vld [vmem:[#allocation3 + $0x44] sm:$0xf]
        %v260 = vld [vmem:[#allocation3 + $0x48] sm:$0xf]
        %v261 = vld [vmem:[#allocation3 + $0x4c] sm:$0xf]
        %v262 = vld [vmem:[#allocation3 + $0x50] sm:$0xf]
        %v263 = vld [vmem:[#allocation3 + $0x54] sm:$0xf]
        %v264 = vld [vmem:[#allocation3 + $0x58] sm:$0xf]
        %v265 = vld [vmem:[#allocation3 + $0x5c] sm:$0xf]
        %v266 = vld [vmem:[#allocation3 + $0x60] sm:$0xf]
        %v267 = vld [vmem:[#allocation3 + $0x64] sm:$0xf]
        %v268 = vld [vmem:[#allocation3 + $0x68] sm:$0xf]
        %v269 = vld [vmem:[#allocation3 + $0x6c] sm:$0xf]
        %v270 = vld [vmem:[#allocation3 + $0x70] sm:$0xf]
        %v271 = vld [vmem:[#allocation3 + $0x74] sm:$0xf]
        %v272 = vld [vmem:[#allocation3 + $0x78] sm:$0xf]
        %v273 = vld [vmem:[#allocation3 + $0x7c] sm:$0xf]
        %v274 = vld [vmem:[#allocation5] sm:$0x1]
        %v276 = vlaneseq
        %v277 = vshrl.u32 %v276, 7
        %v278 = vsub.s32 0, %v277
        %v279 = vrot.slane %v274, %v278
        %v289 = vunpack.c.l.b16 %v234
        %v290 = vunpack.c.h.b16 %v234
        %v291 = vunpack.c.l.b16 %v235
        %v292 = vunpack.c.h.b16 %v235
        %v293 = vunpack.c.l.b16 %v236
        %v294 = vunpack.c.h.b16 %v236
        %v295 = vunpack.c.l.b16 %v237
        %v296 = vunpack.c.h.b16 %v237
        %v297 = vunpack.c.l.b16 %v238
        %v298 = vunpack.c.h.b16 %v238
        %v299 = vunpack.c.l.b16 %v239
        %v300 = vunpack.c.h.b16 %v239
        %v301 = vunpack.c.l.b16 %v240
        %v302 = vunpack.c.h.b16 %v240
        %v303 = vunpack.c.l.b16 %v241
        %v304 = vunpack.c.h.b16 %v241
        %v305 = vpack.c.b16 %v291, %v289
        %v306 = vpack.c.b16 %v292, %v290
        %v307 = vpack.c.b16 %v295, %v293
        %v308 = vpack.c.b16 %v296, %v294
        %v309 = vpack.c.b16 %v299, %v297
        %v310 = vpack.c.b16 %v300, %v298
        %v311 = vpack.c.b16 %v303, %v301
        %v312 = vpack.c.b16 %v304, %v302
        %v353 = vunpack.c.l.b16 %v242
        %v354 = vunpack.c.l.b16 %v243
        %v355 = vunpack.c.l.b16 %v244
        %v356 = vunpack.c.l.b16 %v245
        %v357 = vunpack.c.l.b16 %v246
        %v358 = vunpack.c.l.b16 %v247
        %v359 = vunpack.c.l.b16 %v248
        %v360 = vunpack.c.l.b16 %v249
        %v361 = vunpack.c.l.b16 %v250
        %v362 = vunpack.c.l.b16 %v251
        %v363 = vunpack.c.l.b16 %v252
        %v364 = vunpack.c.l.b16 %v253
        %v365 = vunpack.c.l.b16 %v254
        %v366 = vunpack.c.l.b16 %v255
        %v367 = vunpack.c.l.b16 %v256
        %v368 = vunpack.c.l.b16 %v257
        %v369 = vunpack.c.l.b16 %v258
        %v370 = vunpack.c.l.b16 %v259
        %v371 = vunpack.c.l.b16 %v260
        %v372 = vunpack.c.l.b16 %v261
        %v373 = vunpack.c.l.b16 %v262
        %v374 = vunpack.c.l.b16 %v263
        %v375 = vunpack.c.l.b16 %v264
        %v376 = vunpack.c.l.b16 %v265
        %v377 = vunpack.c.l.b16 %v266
        %v378 = vunpack.c.l.b16 %v267
        %v379 = vunpack.c.l.b16 %v268
        %v380 = vunpack.c.l.b16 %v269
        %v381 = vunpack.c.l.b16 %v270
        %v382 = vunpack.c.l.b16 %v271
        %v383 = vunpack.c.l.b16 %v272
        %v384 = vunpack.c.l.b16 %v273
        %v385 = vpack.c.b16 %v354, %v353
        %v386 = vpack.c.b16 %v356, %v355
        %v387 = vpack.c.b16 %v358, %v357
        %v388 = vpack.c.b16 %v360, %v359
        %v389 = vpack.c.b16 %v362, %v361
        %v390 = vpack.c.b16 %v364, %v363
        %v391 = vpack.c.b16 %v366, %v365
        %v392 = vpack.c.b16 %v368, %v367
        %v393 = vpack.c.b16 %v370, %v369
        %v394 = vpack.c.b16 %v372, %v371
        %v395 = vpack.c.b16 %v374, %v373
        %v396 = vpack.c.b16 %v376, %v375
        %v397 = vpack.c.b16 %v378, %v377
        %v398 = vpack.c.b16 %v380, %v379
        %v399 = vpack.c.b16 %v382, %v381
        %v400 = vpack.c.b16 %v384, %v383
        %417 = vmatprep.subr.bf16.mxu0 0
        %418 = vmatpush1.bf16.msra.mxu0 %v392
        %419 = vmatprep.subr.bf16.mxu0 0
        %420 = vmatpush1.bf16.msra.mxu0 %v391
        %421 = vmatprep.subr.bf16.mxu0 0
        %422 = vmatpush1.bf16.msra.mxu0 %v390
        %423 = vmatprep.subr.bf16.mxu0 0
        %424 = vmatpush1.bf16.msra.mxu0 %v389
        %425 = vmatprep.subr.bf16.mxu0 0
        %426 = vmatpush1.bf16.msra.mxu0 %v388
        %427 = vmatprep.subr.bf16.mxu0 0
        %428 = vmatpush1.bf16.msra.mxu0 %v387
        %429 = vmatprep.subr.bf16.mxu0 0
        %430 = vmatpush1.bf16.msra.mxu0 %v386
        %431 = vmatprep.subr.bf16.mxu0 0
        %432 = vmatpush1.bf16.msra.mxu0 %v385
        %433 = vmatprep.subr.bf16.mxu0 0
        %434 = vmatpush2.bf16.msra.mxu0 %v400
        %435 = vmatprep.subr.bf16.mxu0 0
        %436 = vmatpush2.bf16.msra.mxu0 %v399
        %437 = vmatprep.subr.bf16.mxu0 0
        %438 = vmatpush2.bf16.msra.mxu0 %v398
        %439 = vmatprep.subr.bf16.mxu0 0
        %440 = vmatpush2.bf16.msra.mxu0 %v397
        %441 = vmatprep.subr.bf16.mxu0 0
        %442 = vmatpush2.bf16.msra.mxu0 %v396
        %443 = vmatprep.subr.bf16.mxu0 0
        %444 = vmatpush2.bf16.msra.mxu0 %v395
        %445 = vmatprep.subr.bf16.mxu0 0
        %446 = vmatpush2.bf16.msra.mxu0 %v394
        %447 = vmatprep.subr.bf16.mxu0 0
        %448 = vmatpush2.bf16.msra.mxu0 %v393
        %449 = vmatprep.mubr.bf16.mxu0 %v306
        %450 = vmatmul.mubr.bf16.gmra.mxu0 %v305
        %v451 = vpop.f32.mrf.mxu0
        %v452 = vadd.f32 %v279, %v451
        %v453 = vpop.f32.mrf.mxu0
        %v454 = vpop.f32.mrf.mxu0
        %v455 = vadd.f32 %v279, %v454
        %v456 = vpop.f32.mrf.mxu0
        %457 = vmatprep.mubr.bf16.mxu0 %v308
        %458 = vmatmul.mubr.bf16.gmra.mxu0 %v307
        %v459 = vpop.f32.mrf.mxu0
        %v460 = vadd.f32 %v279, %v459
        %v461 = vpop.f32.mrf.mxu0
        %v462 = vpop.f32.mrf.mxu0
        %v463 = vadd.f32 %v279, %v462
        %v464 = vpop.f32.mrf.mxu0
        %465 = vmatprep.mubr.bf16.mxu0 %v310
        %466 = vmatmul.mubr.bf16.gmra.mxu0 %v309
        %v467 = vpop.f32.mrf.mxu0
        %v468 = vadd.f32 %v279, %v467
        %v469 = vpop.f32.mrf.mxu0
        %v470 = vpop.f32.mrf.mxu0
        %v471 = vadd.f32 %v279, %v470
        %v472 = vpop.f32.mrf.mxu0
        %473 = vmatprep.mubr.bf16.mxu0 %v312
        %474 = vmatmul.mubr.bf16.gmra.mxu0 %v311
        %v475 = vpop.f32.mrf.mxu0
        %v476 = vadd.f32 %v279, %v475
        %v477 = vpop.f32.mrf.mxu0
        %v478 = vpop.f32.mrf.mxu0
        %v479 = vadd.f32 %v279, %v478
        %v480 = vpop.f32.mrf.mxu0
        %481 = vdwg.mxu0
        %v482 = vmax.f32 %v452, 0.0
        %v483 = vmax.f32 %v455, 0.0
        %v484 = vmax.f32 %v460, 0.0
        %v485 = vmax.f32 %v463, 0.0
        %v486 = vmax.f32 %v468, 0.0
        %v487 = vmax.f32 %v471, 0.0
        %v488 = vmax.f32 %v476, 0.0
        %v489 = vmax.f32 %v479, 0.0
        %v490 = vld [vmem:[#allocation2] sm:$0x1]
        %v491 = vadd.f32 %v482, %v483
        %v492 = vadd.f32 %v491, %v484
        %v493 = vadd.f32 %v492, %v485
        %v494 = vadd.f32 %v493, %v486
        %v495 = vadd.f32 %v494, %v487
        %v496 = vadd.f32 %v495, %v488
        %v497 = vadd.f32 %v496, %v489
        %v498 = vrot.slane %v497, 4
        %v499 = vadd.f32 %v497, %v498
        %v500 = vrot.slane %v499, 2
        %v501 = vadd.f32 %v499, %v500
        %v502 = vrot.slane %v501, 1
        %v503 = vadd.f32 %v501, %v502
        %v504 = vadd.f32 %v490, %v503
        %505 = vst [vmem:[#allocation2] sm:$0x1] %v504
        // Predicated region
        $region45: #{discriminator_forward.2} parent=31 // pred_check
          %p506 = pneg %p229
        $region46: #{discriminator_forward.2} parent=31 // pred_check_branch
          %508 = sbr.rel (%p506) target = $region48
        $region47: #{discriminator_forward.2} parent=31 // pred_region
          %v509 = vld [vmem:[#allocation2] sm:$0x1]
          %v510 = vmul.f32 %v509, 0.015625
          %v512 = vlaneseq
          %v513 = vshrl.u32 %v512, 7
          %v514 = vsub.s32 0, %v513
          %v515 = vrot.slane %v510, %v514
          %517 = vst [vmem:[%s227] sm:$0xff] %v515
        $region48: #{discriminator_forward.2} parent=31 // pred_fallthru
          _
        %p518 = scmp.lt.s32.totalorder %s20, 1
        %s519 = scalar_select %p518, %s20, 1
        %s520 = smul.addr %s519, 8
        %s521 = scalar_lea.vmem %s3, %s520
        // Predicated region
        $region49: #{discriminator_forward.2} parent=31 // pred_check
          %p522 = pneg %p116
        $region50: #{discriminator_forward.2} parent=31 // pred_check_branch
          %524 = sbr.rel (%p522) target = $region52
        $region51: #{discriminator_forward.2} parent=31 // pred_region
          _
        $region52: #{discriminator_forward.2} parent=31 // pred_fallthru
          _
      $region32: #{discriminator_forward.2} parent=5 // pred_fallthru
        _
      %p525 = scmp.le.s32.totalorder 2, %s11
      // Predicated region
      $region53: #{discriminator_forward.2} parent=5 // pred_check
        %p526 = pneg %p525
      $region54: #{discriminator_forward.2} parent=5 // pred_check_branch
        %528 = sbr.rel (%p526) target = $region56
      $region55: #{discriminator_forward.2} parent=5 // pred_region
        %s529 = ssub.s32 %s11, 2
        // Predicated region
        $region57: #{discriminator_forward.2} parent=55 // pred_check
          %p530 = pneg %p122
        $region58: #{discriminator_forward.2} parent=55 // pred_check_branch
          %532 = sbr.rel (%p530) target = $region60
        $region59: #{discriminator_forward.2} parent=55 // pred_region
          %p533 = scmp.lt.s32.totalorder %s22, 1
          %s534 = scalar_select %p533, %s22, 1
          %s535 = smul.addr %s534, 8
          %s536 = scalar_lea.vmem %s3, %s535
        $region60: #{discriminator_forward.2} parent=55 // pred_fallthru
          _
      $region56: #{discriminator_forward.2} parent=5 // pred_fallthru
        _
    $region6: #{discriminator_forward.2} parent=1 // loop_footer
      %s15 = sadd.s32 1, %s11
    $region7: #{discriminator_forward.2} parent=1 // loop_footer_branch
      %10 = sbr.rel target = $region3
    $region8: #{discriminator_forward.2} parent=1 // loop_exit
      _
    %537 = vsyncpa [#allocation4], 1
    %s538 = scalar_lea.sflag [#allocation4], 1
    %539 = vsyncpa %s538, 1
    %540 = vsyncpa [#allocation6], 1

// kernel: discriminator_forward.3
$region0: #{discriminator_forward.3}
  #allocation0 [shape = 'u32[]', space=smem, size = 0x4, offset = 0x4, fixed_abs, tag = 'smem constant byte address 0x4 - core index']
  #allocation1 [shape = 'u32[144,128]{1,0:T(1,128)}', space=vmem, size = 0x12000, scoped, tag = 'internal scratch']
  #allocation2 [shape = 'f32[2,512]{1,0:T(2,128)}', space=vmem, size = 0x1000, scoped, tag = 'scratch operand']
  %s0 = inlined_call_operand.vmem [shape: bf16[2,128], index: 0, kind: input, shape index: {}]
  %s1 = inlined_call_operand.hbm [shape: bf16[128,1024], index: 1, kind: input, shape index: {}]
  %s2 = inlined_call_operand.vmem [shape: f32[1,1024], index: 2, kind: input, shape index: {}]
  %s3 = inlined_call_operand.vmem [shape: bf16[1024,512], index: 3, kind: input, shape index: {}]
  %s4 = inlined_call_operand.vmem [shape: f32[1,512], index: 4, kind: input, shape index: {}]
  %s5 = inlined_call_operand.hbm [shape: bf16[512,256], index: 5, kind: input, shape index: {}]
  %s6 = inlined_call_operand.vmem [shape: f32[1,256], index: 6, kind: input, shape index: {}]
  %s7 = inlined_call_operand.vmem [shape: bf16[256,128], index: 7, kind: input, shape index: {}]
  %s8 = inlined_call_operand.vmem [shape: f32[1,128], index: 8, kind: input, shape index: {}]
  %s9 = inlined_call_operand.hbm [shape: f32[2,128], index: 9, kind: output, shape index: {}]
  %s10 = sld [smem:[#allocation0]]
  $region85: #{discriminator_forward.3} parent=0
    _
  %s12 = ssub.s32 1, %s10
  %s13 = scalar_select 0, %s12, %s10
  $region1: #{discriminator_forward.3} parent=0
    #allocation3 [shape = 'u8[131072]{0}', space=vmem, size = 0x20000, scoped, tag = 'input window, operand 1']
    #allocation4 [shape = 's32[2]{0}', space=sflag, size = 0x8, scoped, tag = 'scoped memory for discriminator_forward.3']
    #allocation5 [shape = 's32[2]{0}', space=sflag, size = 0x8, scoped, tag = 'scoped memory for discriminator_forward.3']
    #allocation6 [shape = 'u8[262144]{0}', space=vmem, size = 0x40000, scoped, tag = 'input window, operand 5, single buffered']
    #allocation7 [shape = 's32[1]{0}', space=sflag, size = 0x4, scoped, tag = 'scoped memory for discriminator_forward.3']
    #allocation8 [shape = 'u8[1024]{0}', space=vmem, size = 0x400, scoped, tag = 'output window, operand 0, single buffered']
    %14 = vsyncpa [#allocation4], 0
    %s15 = scalar_lea.sflag [#allocation4], 1
    %16 = vsyncpa %s15, 0
    %17 = vsyncpa [#allocation7], 0
    %18 = vsyncpa [#allocation5], 0
    loop: start=0, step=1, limit=6
    $region2: #{discriminator_forward.3} parent=1 // loop_pre_header
      _
    $region3: #{discriminator_forward.3} parent=1 // loop_header
      %s20 = sphi 0, %s24
      %p21 = scmp.ge.s32.totalorder %s20, 6
      %s28 = sphi 0, %s28
      %s30 = sphi 0, %s28
      %s31 = sphi 0, %s30
      %s45 = sphi 0, %s31
      %s51 = sphi 0, %s53
      %s54 = sphi 0, %s51
      %s55 = sphi 0, %s54
      %s71 = sphi 0, %s55
      %s77 = sphi 0, %s79
      %s80 = sphi 0, %s77
      %s81 = sphi 0, %s80
      %s97 = sphi 0, %s81
      %s103 = sphi 0, %s105
      %s106 = sphi 0, %s103
      %s107 = sphi 0, %s106
      %s123 = sphi 0, %s107
      %s127 = sphi 0, %s127
      %s129 = sphi 0, %s127
      %s130 = sphi 0, %s129
      %s144 = sphi 0, %s130
      %s148 = sphi 0, %s148
      %s150 = sphi 0, %s148
      %s151 = sphi 0, %s150
      %s165 = sphi 0, %s151
      %s169 = sphi 0, %s169
      %s171 = sphi 0, %s169
      %s172 = sphi 0, %s171
      %s186 = sphi 0, %s172
      %s190 = sphi 0, %s190
      %s192 = sphi 0, %s190
      %s193 = sphi 0, %s192
      %s207 = sphi 0, %s193
      %s211 = sphi 0, %s211
      %s213 = sphi 0, %s211
      %s214 = sphi 0, %s213
      %s228 = sphi 0, %s214
      %s232 = sphi 0, %s232
      %s234 = sphi 0, %s232
      %s235 = sphi 0, %s234
      %s249 = sphi 0, %s235
    $region4: #{discriminator_forward.3} parent=1 // loop_header_branch
      %23 = sbr.rel (%p21) target = $region8
    $region5: #{discriminator_forward.3} parent=1 // loop_body
      %s25 = ssub.s32 %s20, 1
      %s26 = ssub.s32 %s20, 2
      %s27 = sadd.s32 %s20, 1
      %s29 = sadd.s32 %s28, 1
      %p32 = scmp.eq.s32.totalorder %s20, 3
      %p33 = scmp.ne.s32.totalorder %s28, %s30
      %p34 = scmp.eq.s32.totalorder %s20, 0
      %p35 = por %p33, %p34
      %p36 = scmp.ne.s32.totalorder %s28, %s30
      %p37 = scmp.eq.s32.totalorder %s25, 3
      %p38 = por %p36, %p37
      %p39 = scmp.ne.s32.totalorder %s30, %s31
      %p40 = scmp.eq.s32.totalorder %s25, 0
      %p41 = por %p39, %p40
      %p42 = scmp.ne.s32.totalorder %s30, %s31
      %p43 = scmp.eq.s32.totalorder %s26, 3
      %p44 = por %p42, %p43
      %p46 = scmp.ne.s32.totalorder %s31, %s45
      %p47 = scmp.eq.s32.totalorder %s26, 0
      %p48 = por %p46, %p47
      %s49 = ssub.s32 %s20, %s27
      %p50 = scmp.eq.s32.totalorder %s49, 0
      %s52 = sadd.s32 %s51, 1
      %s53 = scalar_select %p50, %s51, %s52
      %p56 = pneg %p50
      %p57 = scmp.eq.s32.totalorder %s20, 3
      %p58 = por %p56, %p57
      %p59 = scmp.ne.s32.totalorder %s51, %s54
      %p60 = scmp.eq.s32.totalorder %s20, 0
      %p61 = por %p59, %p60
      %p62 = scmp.ne.s32.totalorder %s51, %s54
      %p63 = scmp.eq.s32.totalorder %s25, 3
      %p64 = por %p62, %p63
      %p65 = scmp.ne.s32.totalorder %s54, %s55
      %p66 = scmp.eq.s32.totalorder %s25, 0
      %p67 = por %p65, %p66
      %p68 = scmp.ne.s32.totalorder %s54, %s55
      %p69 = scmp.eq.s32.totalorder %s26, 3
      %p70 = por %p68, %p69
      %p72 = scmp.ne.s32.totalorder %s55, %s71
      %p73 = scmp.eq.s32.totalorder %s26, 0
      %p74 = por %p72, %p73
      %s75 = ssub.s32 %s20, %s27
      %p76 = scmp.eq.s32.totalorder %s75, 0
      %s78 = sadd.s32 %s77, 1
      %s79 = scalar_select %p76, %s77, %s78
      %p82 = pneg %p76
      %p83 = scmp.eq.s32.totalorder %s20, 3
      %p84 = por %p82, %p83
      %p85 = scmp.ne.s32.totalorder %s77, %s80
      %p86 = scmp.eq.s32.totalorder %s20, 0
      %p87 = por %p85, %p86
      %p88 = scmp.ne.s32.totalorder %s77, %s80
      %p89 = scmp.eq.s32.totalorder %s25, 3
      %p90 = por %p88, %p89
      %p91 = scmp.ne.s32.totalorder %s80, %s81
      %p92 = scmp.eq.s32.totalorder %s25, 0
      %p93 = por %p91, %p92
      %p94 = scmp.ne.s32.totalorder %s80, %s81
      %p95 = scmp.eq.s32.totalorder %s26, 3
      %p96 = por %p94, %p95
      %p98 = scmp.ne.s32.totalorder %s81, %s97
      %p99 = scmp.eq.s32.totalorder %s26, 0
      %p100 = por %p98, %p99
      %s101 = ssub.s32 %s20, %s27
      %p102 = scmp.eq.s32.totalorder %s101, 0
      %s104 = sadd.s32 %s103, 1
      %s105 = scalar_select %p102, %s103, %s104
      %p108 = pneg %p102
      %p109 = scmp.eq.s32.totalorder %s20, 3
      %p110 = por %p108, %p109
      %p111 = scmp.ne.s32.totalorder %s103, %s106
      %p112 = scmp.eq.s32.totalorder %s20, 0
      %p113 = por %p111, %p112
      %p114 = scmp.ne.s32.totalorder %s103, %s106
      %p115 = scmp.eq.s32.totalorder %s25, 3
      %p116 = por %p114, %p115
      %p117 = scmp.ne.s32.totalorder %s106, %s107
      %p118 = scmp.eq.s32.totalorder %s25, 0
      %p119 = por %p117, %p118
      %p120 = scmp.ne.s32.totalorder %s106, %s107
      %p121 = scmp.eq.s32.totalorder %s26, 3
      %p122 = por %p120, %p121
      %p124 = scmp.ne.s32.totalorder %s107, %s123
      %p125 = scmp.eq.s32.totalorder %s26, 0
      %p126 = por %p124, %p125
      %s128 = sadd.s32 %s127, 1
      %p131 = scmp.eq.s32.totalorder %s20, 3
      %p132 = scmp.ne.s32.totalorder %s127, %s129
      %p133 = scmp.eq.s32.totalorder %s20, 0
      %p134 = por %p132, %p133
      %p135 = scmp.ne.s32.totalorder %s127, %s129
      %p136 = scmp.eq.s32.totalorder %s25, 3
      %p137 = por %p135, %p136
      %p138 = scmp.ne.s32.totalorder %s129, %s130
      %p139 = scmp.eq.s32.totalorder %s25, 0
      %p140 = por %p138, %p139
      %p141 = scmp.ne.s32.totalorder %s129, %s130
      %p142 = scmp.eq.s32.totalorder %s26, 3
      %p143 = por %p141, %p142
      %p145 = scmp.ne.s32.totalorder %s130, %s144
      %p146 = scmp.eq.s32.totalorder %s26, 0
      %p147 = por %p145, %p146
      %s149 = sadd.s32 %s148, 1
      %p152 = scmp.eq.s32.totalorder %s20, 3
      %p153 = scmp.ne.s32.totalorder %s148, %s150
      %p154 = scmp.eq.s32.totalorder %s20, 0
      %p155 = por %p153, %p154
      %p156 = scmp.ne.s32.totalorder %s148, %s150
      %p157 = scmp.eq.s32.totalorder %s25, 3
      %p158 = por %p156, %p157
      %p159 = scmp.ne.s32.totalorder %s150, %s151
      %p160 = scmp.eq.s32.totalorder %s25, 0
      %p161 = por %p159, %p160
      %p162 = scmp.ne.s32.totalorder %s150, %s151
      %p163 = scmp.eq.s32.totalorder %s26, 3
      %p164 = por %p162, %p163
      %p166 = scmp.ne.s32.totalorder %s151, %s165
      %p167 = scmp.eq.s32.totalorder %s26, 0
      %p168 = por %p166, %p167
      %s170 = sadd.s32 %s169, 1
      %p173 = scmp.eq.s32.totalorder %s20, 3
      %p174 = scmp.ne.s32.totalorder %s169, %s171
      %p175 = scmp.eq.s32.totalorder %s20, 0
      %p176 = por %p174, %p175
      %p177 = scmp.ne.s32.totalorder %s169, %s171
      %p178 = scmp.eq.s32.totalorder %s25, 3
      %p179 = por %p177, %p178
      %p180 = scmp.ne.s32.totalorder %s171, %s172
      %p181 = scmp.eq.s32.totalorder %s25, 0
      %p182 = por %p180, %p181
      %p183 = scmp.ne.s32.totalorder %s171, %s172
      %p184 = scmp.eq.s32.totalorder %s26, 3
      %p185 = por %p183, %p184
      %p187 = scmp.ne.s32.totalorder %s172, %s186
      %p188 = scmp.eq.s32.totalorder %s26, 0
      %p189 = por %p187, %p188
      %s191 = sadd.s32 %s190, 1
      %p194 = scmp.eq.s32.totalorder %s20, 3
      %p195 = scmp.ne.s32.totalorder %s190, %s192
      %p196 = scmp.eq.s32.totalorder %s20, 0
      %p197 = por %p195, %p196
      %p198 = scmp.ne.s32.totalorder %s190, %s192
      %p199 = scmp.eq.s32.totalorder %s25, 3
      %p200 = por %p198, %p199
      %p201 = scmp.ne.s32.totalorder %s192, %s193
      %p202 = scmp.eq.s32.totalorder %s25, 0
      %p203 = por %p201, %p202
      %p204 = scmp.ne.s32.totalorder %s192, %s193
      %p205 = scmp.eq.s32.totalorder %s26, 3
      %p206 = por %p204, %p205
      %p208 = scmp.ne.s32.totalorder %s193, %s207
      %p209 = scmp.eq.s32.totalorder %s26, 0
      %p210 = por %p208, %p209
      %s212 = sadd.s32 %s211, 1
      %p215 = scmp.eq.s32.totalorder %s20, 3
      %p216 = scmp.ne.s32.totalorder %s211, %s213
      %p217 = scmp.eq.s32.totalorder %s20, 0
      %p218 = por %p216, %p217
      %p219 = scmp.ne.s32.totalorder %s211, %s213
      %p220 = scmp.eq.s32.totalorder %s25, 3
      %p221 = por %p219, %p220
      %p222 = scmp.ne.s32.totalorder %s213, %s214
      %p223 = scmp.eq.s32.totalorder %s25, 0
      %p224 = por %p222, %p223
      %p225 = scmp.ne.s32.totalorder %s213, %s214
      %p226 = scmp.eq.s32.totalorder %s26, 3
      %p227 = por %p225, %p226
      %p229 = scmp.ne.s32.totalorder %s214, %s228
      %p230 = scmp.eq.s32.totalorder %s26, 0
      %p231 = por %p229, %p230
      %s233 = sadd.s32 %s232, 1
      %p236 = scmp.eq.s32.totalorder %s20, 3
      %p237 = scmp.ne.s32.totalorder %s232, %s234
      %p238 = scmp.eq.s32.totalorder %s20, 0
      %p239 = por %p237, %p238
      %p240 = scmp.ne.s32.totalorder %s232, %s234
      %p241 = scmp.eq.s32.totalorder %s25, 3
      %p242 = por %p240, %p241
      %p243 = scmp.ne.s32.totalorder %s234, %s235
      %p244 = scmp.eq.s32.totalorder %s25, 0
      %p245 = por %p243, %p244
      %p246 = scmp.ne.s32.totalorder %s234, %s235
      %p247 = scmp.eq.s32.totalorder %s26, 3
      %p248 = por %p246, %p247
      %p250 = scmp.ne.s32.totalorder %s235, %s249
      %p251 = scmp.eq.s32.totalorder %s26, 0
      %p252 = por %p250, %p251
      %p253 = scmp.le.s32.totalorder 1, %s20
      %p254 = scmp.lt.s32.totalorder %s20, 5
      %p255 = pnand %p253, %p254
      %p256 = pneg %p255
      // Predicated region
      $region9: #{discriminator_forward.3} parent=5 // pred_check
        _
      $region10: #{discriminator_forward.3} parent=5 // pred_check_branch
        %258 = sbr.rel (%p255) target = $region12
      $region11: #{discriminator_forward.3} parent=5 // pred_region
        %s259 = ssub.s32 %s20, 1
        // Predicated region
        $region13: #{discriminator_forward.3} parent=11 // pred_check
          %p260 = pneg %p41
        $region14: #{discriminator_forward.3} parent=11 // pred_check_branch
          %262 = sbr.rel (%p260) target = $region16
        $region15: #{discriminator_forward.3} parent=11 // pred_region
          _
        $region16: #{discriminator_forward.3} parent=11 // pred_fallthru
          _
        // Predicated region
        $region17: #{discriminator_forward.3} parent=11 // pred_check
          %p263 = pneg %p140
        $region18: #{discriminator_forward.3} parent=11 // pred_check_branch
          %265 = sbr.rel (%p263) target = $region20
        $region19: #{discriminator_forward.3} parent=11 // pred_region
          _
        $region20: #{discriminator_forward.3} parent=11 // pred_fallthru
          _
        // Predicated region
        $region21: #{discriminator_forward.3} parent=11 // pred_check
          %p266 = pneg %p161
        $region22: #{discriminator_forward.3} parent=11 // pred_check_branch
          %268 = sbr.rel (%p266) target = $region24
        $region23: #{discriminator_forward.3} parent=11 // pred_region
          %s270 = ssub.s32 8192, 8192
          %271 = vsyncadd [#allocation7], %s270
          %s272 = sshll.u32 [#allocation6], 4
          %s273 = int_to_ptr.vmem [resolvable:$true] %s272
          %278 = dma.hbm_to_vmem [thread:$0]  %s5, 8192, %s273, [#allocation7], 128, 128, 8
        $region24: #{discriminator_forward.3} parent=11 // pred_fallthru
          _
        // Predicated region
        $region25: #{discriminator_forward.3} parent=11 // pred_check
          %p279 = pneg %p182
        $region26: #{discriminator_forward.3} parent=11 // pred_check_branch
          %281 = sbr.rel (%p279) target = $region28
        $region27: #{discriminator_forward.3} parent=11 // pred_region
          _
        $region28: #{discriminator_forward.3} parent=11 // pred_fallthru
          _
        // Predicated region
        $region29: #{discriminator_forward.3} parent=11 // pred_check
          %p282 = pneg %p203
        $region30: #{discriminator_forward.3} parent=11 // pred_check_branch
          %284 = sbr.rel (%p282) target = $region32
        $region31: #{discriminator_forward.3} parent=11 // pred_region
          _
        $region32: #{discriminator_forward.3} parent=11 // pred_fallthru
          _
        // Predicated region
        $region33: #{discriminator_forward.3} parent=11 // pred_check
          %p285 = pneg %p224
        $region34: #{discriminator_forward.3} parent=11 // pred_check_branch
          %287 = sbr.rel (%p285) target = $region36
        $region35: #{discriminator_forward.3} parent=11 // pred_region
          _
        $region36: #{discriminator_forward.3} parent=11 // pred_fallthru
          _
      $region12: #{discriminator_forward.3} parent=5 // pred_fallthru
        _
      %p288 = scmp.lt.s32.totalorder %s20, 4
      // Predicated region
      $region37: #{discriminator_forward.3} parent=5 // pred_check
        %p289 = pneg %p288
      $region38: #{discriminator_forward.3} parent=5 // pred_check_branch
        %291 = sbr.rel (%p289) target = $region40
      $region39: #{discriminator_forward.3} parent=5 // pred_region
        // Predicated region
        $region41: #{discriminator_forward.3} parent=39 // pred_check
          %p292 = pneg %p61
        $region42: #{discriminator_forward.3} parent=39 // pred_check_branch
          %294 = sbr.rel (%p292) target = $region44
        $region43: #{discriminator_forward.3} parent=39 // pred_region
          %s295 = sand.u32 %s51, 1
          %s296 = scalar_lea.sflag [#allocation4], %s295
          %s297 = sand.u32 %s51, 1
          %s298 = smul.addr %s297, 128
          %s299 = scalar_lea.vmem [#allocation3], %s298
          %s300 = smul.u32 2, %s20
          %s302 = ssub.s32 2048, 2048
          %303 = vsyncadd %s296, %s302
          %s304 = smul.addr %s300, 64
          %s305 = scalar_lea.hbm %s1, %s304
          %s306 = sshll.u32 %s299, 4
          %s307 = int_to_ptr.vmem [resolvable:$true] %s306
          %312 = dma.hbm_to_vmem [thread:$0]  %s305, 2048, %s307, %s296, 512, 128, 8
        $region44: #{discriminator_forward.3} parent=39 // pred_fallthru
          _
        // Predicated region
        $region45: #{discriminator_forward.3} parent=39 // pred_check
          %p313 = pneg %p87
        $region46: #{discriminator_forward.3} parent=39 // pred_check_branch
          %315 = sbr.rel (%p313) target = $region48
        $region47: #{discriminator_forward.3} parent=39 // pred_region
          %s316 = smul.u32 2, %s20
          %p317 = scmp.lt.s32.totalorder %s316, 7
          %s318 = scalar_select %p317, %s316, 7
          %s319 = scalar_lea.vmem %s2, %s318
          %s320 = smul.u32 2, %s20
        $region48: #{discriminator_forward.3} parent=39 // pred_fallthru
          _
        // Predicated region
        $region49: #{discriminator_forward.3} parent=39 // pred_check
          %p321 = pneg %p113
        $region50: #{discriminator_forward.3} parent=39 // pred_check_branch
          %323 = sbr.rel (%p321) target = $region52
        $region51: #{discriminator_forward.3} parent=39 // pred_region
          %s324 = smul.u32 32, %s20
          %p325 = scmp.lt.s32.totalorder %s324, 127
          %s326 = scalar_select %p325, %s324, 127
          %s327 = smul.addr %s326, 4
          %s328 = smul.addr %s327, 4
          %s329 = scalar_lea.vmem %s3, %s328
          %s330 = smul.u32 32, %s20
        $region52: #{discriminator_forward.3} parent=39 // pred_fallthru
          _
      $region40: #{discriminator_forward.3} parent=5 // pred_fallthru
        _
      %p331 = scmp.le.s32.totalorder 1, %s20
      %p332 = scmp.lt.s32.totalorder %s20, 5
      %p333 = pnand %p331, %p332
      %p334 = pneg %p333
      // Predicated region
      $region53: #{discriminator_forward.3} parent=5 // pred_check
        _
      $region54: #{discriminator_forward.3} parent=5 // pred_check_branch
        %336 = sbr.rel (%p333) target = $region56
      $region55: #{discriminator_forward.3} parent=5 // pred_region
        %s337 = ssub.s32 %s20, 1
        %s338 = sand.u32 %s54, 1
        %s339 = scalar_lea.sflag [#allocation4], %s338
        %s340 = sand.u32 %s54, 1
        %s341 = smul.addr %s340, 128
        %s342 = scalar_lea.vmem [#allocation3], %s341
        // Predicated region
        $region57: #{discriminator_forward.3} parent=55 // pred_check
          %p343 = pneg %p67
        $region58: #{discriminator_forward.3} parent=55 // pred_check_branch
          %345 = sbr.rel (%p343) target = $region60
        $region59: #{discriminator_forward.3} parent=55 // pred_region
          %346 = dma.done %s339, 2048
        $region60: #{discriminator_forward.3} parent=55 // pred_fallthru
          _
        // Predicated region
        $region61: #{discriminator_forward.3} parent=55 // pred_check
          %p347 = pneg %p161
        $region62: #{discriminator_forward.3} parent=55 // pred_check_branch
          %349 = sbr.rel (%p347) target = $region64
        $region63: #{discriminator_forward.3} parent=55 // pred_region
          %350 = dma.done [#allocation7], 8192
        $region64: #{discriminator_forward.3} parent=55 // pred_fallthru
          _
        %p351 = pneg %p41
        %p352 = pneg %p38
        %s353 = sand.u32 %s54, 1
        %s354 = scalar_lea.sflag [#allocation4], %s353
        %s355 = sand.u32 %s54, 1
        %s356 = smul.addr %s355, 128
        %s357 = scalar_lea.vmem [#allocation3], %s356
        %p358 = pneg %p67
        %p359 = pneg %p64
        %s360 = smul.u32 2, %s25
        %p361 = scmp.lt.s32.totalorder %s360, 7
        %s362 = scalar_select %p361, %s360, 7
        %s363 = scalar_lea.vmem %s2, %s362
        %p364 = pneg %p93
        %p365 = pneg %p90
        %s366 = smul.u32 32, %s25
        %p367 = scmp.lt.s32.totalorder %s366, 127
        %s368 = scalar_select %p367, %s366, 127
        %s369 = smul.addr %s368, 4
        %s370 = smul.addr %s369, 4
        %s371 = scalar_lea.vmem %s3, %s370
        %p372 = pneg %p119
        %p373 = pneg %p116
        %p374 = pneg %p140
        %p375 = pneg %p137
        %p376 = pneg %p161
        %p377 = pneg %p158
        %p378 = pneg %p182
        %p379 = pneg %p179
        %p380 = pneg %p203
        %p381 = pneg %p200
        %p382 = pneg %p224
        %p383 = pneg %p221
        %p384 = pneg %p245
        %p385 = pneg %p242
        %s386 = smul.u32 2, %s25
        %s387 = smul.u32 2, %s25
        %p388 = scmp.lt.s32.totalorder %s387, 7
        %s389 = scalar_select %p388, %s387, 7
        %s390 = scalar_lea.vmem %s2, %s389
        %s391 = smul.u32 2, %s25
        %s392 = smul.u32 32, %s25
        %p393 = scmp.lt.s32.totalorder %s392, 127
        %s394 = scalar_select %p393, %s392, 127
        %s395 = smul.addr %s394, 4
        %s396 = smul.addr %s395, 4
        %s397 = scalar_lea.vmem %s3, %s396
        %s398 = smul.u32 32, %s25
        %p400 = scmp.eq.s32.totalorder %s25, 0
        // Predicated region
        $region65: #{discriminator_forward.3} parent=55 // pred_check
          %p401 = pneg %p400
        $region66: #{discriminator_forward.3} parent=55 // pred_check_branch
          %403 = sbr.rel (%p401) target = $region68
        $region67: #{discriminator_forward.3} parent=55 // pred_region
          %404 = vst [vmem:[#allocation2] sm:$0xff] 0.0
        $region68: #{discriminator_forward.3} parent=55 // pred_fallthru
          _
        %v405 = vld [vmem:[%s0] sm:$0x1]
        %v406 = vld [vmem:[%s342] sm:$0xff]
        %v407 = vld [vmem:[%s342 + $0x8] sm:$0xff]
        %v408 = vld [vmem:[%s342 + $0x10] sm:$0xff]
        %v409 = vld [vmem:[%s342 + $0x18] sm:$0xff]
        %v410 = vld [vmem:[%s342 + $0x20] sm:$0xff]
        %v411 = vld [vmem:[%s342 + $0x28] sm:$0xff]
        %v412 = vld [vmem:[%s342 + $0x30] sm:$0xff]
        %v413 = vld [vmem:[%s342 + $0x38] sm:$0xff]
        %v414 = vld [vmem:[%s342 + $0x40] sm:$0xff]
        %v415 = vld [vmem:[%s342 + $0x48] sm:$0xff]
        %v416 = vld [vmem:[%s342 + $0x50] sm:$0xff]
        %v417 = vld [vmem:[%s342 + $0x58] sm:$0xff]
        %v418 = vld [vmem:[%s342 + $0x60] sm:$0xff]
        %v419 = vld [vmem:[%s342 + $0x68] sm:$0xff]
        %v420 = vld [vmem:[%s342 + $0x70] sm:$0xff]
        %v421 = vld [vmem:[%s342 + $0x78] sm:$0xff]
        %v422 = vld [vmem:[%s390] sm:$0x3]
        %v424 = vlaneseq
        %v425 = vshrl.u32 %v424, 7
        %v426 = vsub.s32 0, %v425
        %v427 = vrot.slane %v422, %v426
        %v428 = vlaneseq
        %v429 = vshrl.u32 %v428, 7
        %v430 = vsub.s32 1, %v429
        %v431 = vrot.slane %v422, %v430
        %v450 = vunpack.c.l.b16 %v406
        %v451 = vunpack.c.h.b16 %v406
        %v452 = vunpack.c.l.b16 %v407
        %v453 = vunpack.c.h.b16 %v407
        %v454 = vunpack.c.l.b16 %v408
        %v455 = vunpack.c.h.b16 %v408
        %v456 = vunpack.c.l.b16 %v409
        %v457 = vunpack.c.h.b16 %v409
        %v458 = vunpack.c.l.b16 %v410
        %v459 = vunpack.c.h.b16 %v410
        %v460 = vunpack.c.l.b16 %v411
        %v461 = vunpack.c.h.b16 %v411
        %v462 = vunpack.c.l.b16 %v412
        %v463 = vunpack.c.h.b16 %v412
        %v464 = vunpack.c.l.b16 %v413
        %v465 = vunpack.c.h.b16 %v413
        %v466 = vunpack.c.l.b16 %v414
        %v467 = vunpack.c.h.b16 %v414
        %v468 = vunpack.c.l.b16 %v415
        %v469 = vunpack.c.h.b16 %v415
        %v470 = vunpack.c.l.b16 %v416
        %v471 = vunpack.c.h.b16 %v416
        %v472 = vunpack.c.l.b16 %v417
        %v473 = vunpack.c.h.b16 %v417
        %v474 = vunpack.c.l.b16 %v418
        %v475 = vunpack.c.h.b16 %v418
        %v476 = vunpack.c.l.b16 %v419
        %v477 = vunpack.c.h.b16 %v419
        %v478 = vunpack.c.l.b16 %v420
        %v479 = vunpack.c.h.b16 %v420
        %v480 = vunpack.c.l.b16 %v421
        %v481 = vunpack.c.h.b16 %v421
        %v482 = vpack.c.b16 %v452, %v450
        %v483 = vpack.c.b16 %v453, %v451
        %v484 = vpack.c.b16 %v456, %v454
        %v485 = vpack.c.b16 %v457, %v455
        %v486 = vpack.c.b16 %v460, %v458
        %v487 = vpack.c.b16 %v461, %v459
        %v488 = vpack.c.b16 %v464, %v462
        %v489 = vpack.c.b16 %v465, %v463
        %v490 = vpack.c.b16 %v468, %v466
        %v491 = vpack.c.b16 %v469, %v467
        %v492 = vpack.c.b16 %v472, %v470
        %v493 = vpack.c.b16 %v473, %v471
        %v494 = vpack.c.b16 %v476, %v474
        %v495 = vpack.c.b16 %v477, %v475
        %v496 = vpack.c.b16 %v480, %v478
        %v497 = vpack.c.b16 %v481, %v479
        %514 = vmatprep.subr.bf16.mxu0 %v497
        %515 = vmatpush1.bf16.msra.mxu0 %v496
        %516 = vmatprep.subr.bf16.mxu0 %v495
        %517 = vmatpush1.bf16.msra.mxu0 %v494
        %518 = vmatprep.subr.bf16.mxu0 %v493
        %519 = vmatpush1.bf16.msra.mxu0 %v492
        %520 = vmatprep.subr.bf16.mxu0 %v491
        %521 = vmatpush1.bf16.msra.mxu0 %v490
        %522 = vmatprep.subr.bf16.mxu0 %v489
        %523 = vmatpush1.bf16.msra.mxu0 %v488
        %524 = vmatprep.subr.bf16.mxu0 %v487
        %525 = vmatpush1.bf16.msra.mxu0 %v486
        %526 = vmatprep.subr.bf16.mxu0 %v485
        %527 = vmatpush1.bf16.msra.mxu0 %v484
        %528 = vmatprep.subr.bf16.mxu0 %v483
        %529 = vmatpush1.bf16.msra.mxu0 %v482
        %530 = vmatprep.subr.bf16.mxu0 0
        %531 = vmatpush2.bf16.msra.mxu0 0
        %532 = vmatprep.subr.bf16.mxu0 0
        %533 = vmatpush2.bf16.msra.mxu0 0
        %534 = vmatprep.subr.bf16.mxu0 0
        %535 = vmatpush2.bf16.msra.mxu0 0
        %536 = vmatprep.subr.bf16.mxu0 0
        %537 = vmatpush2.bf16.msra.mxu0 0
        %538 = vmatprep.subr.bf16.mxu0 0
        %539 = vmatpush2.bf16.msra.mxu0 0
        %540 = vmatprep.subr.bf16.mxu0 0
        %541 = vmatpush2.bf16.msra.mxu0 0
        %542 = vmatprep.subr.bf16.mxu0 0
        %543 = vmatpush2.bf16.msra.mxu0 0
        %544 = vmatprep.subr.bf16.mxu0 0
        %545 = vmatpush2.bf16.msra.mxu0 0
        %546 = vmatprep.mubr.bf16.mxu0 0
        %547 = vmatmul.mubr.bf16.gmra.mxu0 %v405
        %v548 = vpop.f32.mrf.mxu0
        %v549 = vadd.f32 %v427, %v548
        %v550 = vpop.f32.mrf.mxu0
        %v551 = vadd.f32 %v431, %v550
        %v552 = vpop.f32.mrf.mxu0
        %v553 = vpop.f32.mrf.mxu0
        %554 = vdwg.mxu0
        %vm555 = vcmp.gt.f32.partialorder %v549, 0.0
        %vm556 = vcmp.gt.f32.partialorder %v551, 0.0
        %v557 = vmul.f32 %v549, 1.442695
        %v558 = vpow.pop %v557
        %v559 = vmul.f32 %v551, 1.442695
        %v560 = vpow.pop %v559
        %v561 = vsub.f32 %v558, 1.0
        %v562 = vsub.f32 %v560, 1.0
        %v563 = vmul.f32 %v561, 1.6732632
        %v564 = vmul.f32 %v562, 1.6732632
        %v565 = vsel %vm555, %v549, %v563
        %v566 = vsel %vm556, %v551, %v564
        %v567 = vmul.f32 %v565, 1.050701
        %v568 = vmul.f32 %v566, 1.050701
        %v569 = vpack.c.bf16 %v567, %v567
        %v570 = vpack.c.bf16 %v568, %v568
        %v571 = vld [vmem:[#allocation2] sm:$0xff]
        %v572 = vld [vmem:[%s397] sm:$0xff]
        %v573 = vld [vmem:[%s397 + $0x8] sm:$0xff]
        %v574 = vld [vmem:[%s397 + $0x10] sm:$0xff]
        %v575 = vld [vmem:[%s397 + $0x18] sm:$0xff]
        %v576 = vld [vmem:[%s397 + $0x20] sm:$0xff]
        %v577 = vld [vmem:[%s397 + $0x28] sm:$0xff]
        %v578 = vld [vmem:[%s397 + $0x30] sm:$0xff]
        %v579 = vld [vmem:[%s397 + $0x38] sm:$0xff]
        %v580 = vld [vmem:[%s397 + $0x40] sm:$0xff]
        %v581 = vld [vmem:[%s397 + $0x48] sm:$0xff]
        %v582 = vld [vmem:[%s397 + $0x50] sm:$0xff]
        %v583 = vld [vmem:[%s397 + $0x58] sm:$0xff]
        %v584 = vld [vmem:[%s397 + $0x60] sm:$0xff]
        %v585 = vld [vmem:[%s397 + $0x68] sm:$0xff]
        %v586 = vld [vmem:[%s397 + $0x70] sm:$0xff]
        %v587 = vld [vmem:[%s397 + $0x78] sm:$0xff]
        %v588 = vld [vmem:[%s397 + $0x80] sm:$0xff]
        %v589 = vld [vmem:[%s397 + $0x88] sm:$0xff]
        %v590 = vld [vmem:[%s397 + $0x90] sm:$0xff]
        %v591 = vld [vmem:[%s397 + $0x98] sm:$0xff]
        %v592 = vld [vmem:[%s397 + $0xa0] sm:$0xff]
        %v593 = vld [vmem:[%s397 + $0xa8] sm:$0xff]
        %v594 = vld [vmem:[%s397 + $0xb0] sm:$0xff]
        %v595 = vld [vmem:[%s397 + $0xb8] sm:$0xff]
        %v596 = vld [vmem:[%s397 + $0xc0] sm:$0xff]
        %v597 = vld [vmem:[%s397 + $0xc8] sm:$0xff]
        %v598 = vld [vmem:[%s397 + $0xd0] sm:$0xff]
        %v599 = vld [vmem:[%s397 + $0xd8] sm:$0xff]
        %v600 = vld [vmem:[%s397 + $0xe0] sm:$0xff]
        %v601 = vld [vmem:[%s397 + $0xe8] sm:$0xff]
        %v602 = vld [vmem:[%s397 + $0xf0] sm:$0xff]
        %v603 = vld [vmem:[%s397 + $0xf8] sm:$0xff]
        %v604 = vld [vmem:[%s397 + $0x100] sm:$0xff]
        %v605 = vld [vmem:[%s397 + $0x108] sm:$0xff]
        %v606 = vld [vmem:[%s397 + $0x110] sm:$0xff]
        %v607 = vld [vmem:[%s397 + $0x118] sm:$0xff]
        %v608 = vld [vmem:[%s397 + $0x120] sm:$0xff]
        %v609 = vld [vmem:[%s397 + $0x128] sm:$0xff]
        %v610 = vld [vmem:[%s397 + $0x130] sm:$0xff]
        %v611 = vld [vmem:[%s397 + $0x138] sm:$0xff]
        %v612 = vld [vmem:[%s397 + $0x140] sm:$0xff]
        %v613 = vld [vmem:[%s397 + $0x148] sm:$0xff]
        %v614 = vld [vmem:[%s397 + $0x150] sm:$0xff]
        %v615 = vld [vmem:[%s397 + $0x158] sm:$0xff]
        %v616 = vld [vmem:[%s397 + $0x160] sm:$0xff]
        %v617 = vld [vmem:[%s397 + $0x168] sm:$0xff]
        %v618 = vld [vmem:[%s397 + $0x170] sm:$0xff]
        %v619 = vld [vmem:[%s397 + $0x178] sm:$0xff]
        %v620 = vld [vmem:[%s397 + $0x180] sm:$0xff]
        %v621 = vld [vmem:[%s397 + $0x188] sm:$0xff]
        %v622 = vld [vmem:[%s397 + $0x190] sm:$0xff]
        %v623 = vld [vmem:[%s397 + $0x198] sm:$0xff]
        %v624 = vld [vmem:[%s397 + $0x1a0] sm:$0xff]
        %v625 = vld [vmem:[%s397 + $0x1a8] sm:$0xff]
        %v626 = vld [vmem:[%s397 + $0x1b0] sm:$0xff]
        %v627 = vld [vmem:[%s397 + $0x1b8] sm:$0xff]
        %v628 = vld [vmem:[%s397 + $0x1c0] sm:$0xff]
        %v629 = vld [vmem:[%s397 + $0x1c8] sm:$0xff]
        %v630 = vld [vmem:[%s397 + $0x1d0] sm:$0xff]
        %v631 = vld [vmem:[%s397 + $0x1d8] sm:$0xff]
        %v632 = vld [vmem:[%s397 + $0x1e0] sm:$0xff]
        %v633 = vld [vmem:[%s397 + $0x1e8] sm:$0xff]
        %v634 = vld [vmem:[%s397 + $0x1f0] sm:$0xff]
        %v635 = vld [vmem:[%s397 + $0x1f8] sm:$0xff]
        %v700 = vunpack.c.l.b16 %v572
        %v701 = vunpack.c.h.b16 %v572
        %v702 = vunpack.c.l.b16 %v573
        %v703 = vunpack.c.h.b16 %v573
        %v704 = vunpack.c.l.b16 %v574
        %v705 = vunpack.c.h.b16 %v574
        %v706 = vunpack.c.l.b16 %v575
        %v707 = vunpack.c.h.b16 %v575
        %v708 = vunpack.c.l.b16 %v576
        %v709 = vunpack.c.h.b16 %v576
        %v710 = vunpack.c.l.b16 %v577
        %v711 = vunpack.c.h.b16 %v577
        %v712 = vunpack.c.l.b16 %v578
        %v713 = vunpack.c.h.b16 %v578
        %v714 = vunpack.c.l.b16 %v579
        %v715 = vunpack.c.h.b16 %v579
        %v716 = vunpack.c.l.b16 %v580
        %v717 = vunpack.c.h.b16 %v580
        %v718 = vunpack.c.l.b16 %v581
        %v719 = vunpack.c.h.b16 %v581
        %v720 = vunpack.c.l.b16 %v582
        %v721 = vunpack.c.h.b16 %v582
        %v722 = vunpack.c.l.b16 %v583
        %v723 = vunpack.c.h.b16 %v583
        %v724 = vunpack.c.l.b16 %v584
        %v725 = vunpack.c.h.b16 %v584
        %v726 = vunpack.c.l.b16 %v585
        %v727 = vunpack.c.h.b16 %v585
        %v728 = vunpack.c.l.b16 %v586
        %v729 = vunpack.c.h.b16 %v586
        %v730 = vunpack.c.l.b16 %v587
        %v731 = vunpack.c.h.b16 %v587
        %v732 = vunpack.c.l.b16 %v588
        %v733 = vunpack.c.h.b16 %v588
        %v734 = vunpack.c.l.b16 %v589
        %v735 = vunpack.c.h.b16 %v589
        %v736 = vunpack.c.l.b16 %v590
        %v737 = vunpack.c.h.b16 %v590
        %v738 = vunpack.c.l.b16 %v591
        %v739 = vunpack.c.h.b16 %v591
        %v740 = vunpack.c.l.b16 %v592
        %v741 = vunpack.c.h.b16 %v592
        %v742 = vunpack.c.l.b16 %v593
        %v743 = vunpack.c.h.b16 %v593
        %v744 = vunpack.c.l.b16 %v594
        %v745 = vunpack.c.h.b16 %v594
        %v746 = vunpack.c.l.b16 %v595
        %v747 = vunpack.c.h.b16 %v595
        %v748 = vunpack.c.l.b16 %v596
        %v749 = vunpack.c.h.b16 %v596
        %v750 = vunpack.c.l.b16 %v597
        %v751 = vunpack.c.h.b16 %v597
        %v752 = vunpack.c.l.b16 %v598
        %v753 = vunpack.c.h.b16 %v598
        %v754 = vunpack.c.l.b16 %v599
        %v755 = vunpack.c.h.b16 %v599
        %v756 = vunpack.c.l.b16 %v600
        %v757 = vunpack.c.h.b16 %v600
        %v758 = vunpack.c.l.b16 %v601
        %v759 = vunpack.c.h.b16 %v601
        %v760 = vunpack.c.l.b16 %v602
        %v761 = vunpack.c.h.b16 %v602
        %v762 = vunpack.c.l.b16 %v603
        %v763 = vunpack.c.h.b16 %v603
        %v764 = vunpack.c.l.b16 %v604
        %v765 = vunpack.c.h.b16 %v604
        %v766 = vunpack.c.l.b16 %v605
        %v767 = vunpack.c.h.b16 %v605
        %v768 = vunpack.c.l.b16 %v606
        %v769 = vunpack.c.h.b16 %v606
        %v770 = vunpack.c.l.b16 %v607
        %v771 = vunpack.c.h.b16 %v607
        %v772 = vunpack.c.l.b16 %v608
        %v773 = vunpack.c.h.b16 %v608
        %v774 = vunpack.c.l.b16 %v609
        %v775 = vunpack.c.h.b16 %v609
        %v776 = vunpack.c.l.b16 %v610
        %v777 = vunpack.c.h.b16 %v610
        %v778 = vunpack.c.l.b16 %v611
        %v779 = vunpack.c.h.b16 %v611
        %v780 = vunpack.c.l.b16 %v612
        %v781 = vunpack.c.h.b16 %v612
        %v782 = vunpack.c.l.b16 %v613
        %v783 = vunpack.c.h.b16 %v613
        %v784 = vunpack.c.l.b16 %v614
        %v785 = vunpack.c.h.b16 %v614
        %v786 = vunpack.c.l.b16 %v615
        %v787 = vunpack.c.h.b16 %v615
        %v788 = vunpack.c.l.b16 %v616
        %v789 = vunpack.c.h.b16 %v616
        %v790 = vunpack.c.l.b16 %v617
        %v791 = vunpack.c.h.b16 %v617
        %v792 = vunpack.c.l.b16 %v618
        %v793 = vunpack.c.h.b16 %v618
        %v794 = vunpack.c.l.b16 %v619
        %v795 = vunpack.c.h.b16 %v619
        %v796 = vunpack.c.l.b16 %v620
        %v797 = vunpack.c.h.b16 %v620
        %v798 = vunpack.c.l.b16 %v621
        %v799 = vunpack.c.h.b16 %v621
        %v800 = vunpack.c.l.b16 %v622
        %v801 = vunpack.c.h.b16 %v622
        %v802 = vunpack.c.l.b16 %v623
        %v803 = vunpack.c.h.b16 %v623
        %v804 = vunpack.c.l.b16 %v624
        %v805 = vunpack.c.h.b16 %v624
        %v806 = vunpack.c.l.b16 %v625
        %v807 = vunpack.c.h.b16 %v625
        %v808 = vunpack.c.l.b16 %v626
        %v809 = vunpack.c.h.b16 %v626
        %v810 = vunpack.c.l.b16 %v627
        %v811 = vunpack.c.h.b16 %v627
        %v812 = vunpack.c.l.b16 %v628
        %v813 = vunpack.c.h.b16 %v628
        %v814 = vunpack.c.l.b16 %v629
        %v815 = vunpack.c.h.b16 %v629
        %v816 = vunpack.c.l.b16 %v630
        %v817 = vunpack.c.h.b16 %v630
        %v818 = vunpack.c.l.b16 %v631
        %v819 = vunpack.c.h.b16 %v631
        %v820 = vunpack.c.l.b16 %v632
        %v821 = vunpack.c.h.b16 %v632
        %v822 = vunpack.c.l.b16 %v633
        %v823 = vunpack.c.h.b16 %v633
        %v824 = vunpack.c.l.b16 %v634
        %v825 = vunpack.c.h.b16 %v634
        %v826 = vunpack.c.l.b16 %v635
        %v827 = vunpack.c.h.b16 %v635
        %v828 = vpack.c.b16 %v704, %v700
        %v829 = vpack.c.b16 %v705, %v701
        %v830 = vpack.c.b16 %v706, %v702
        %v831 = vpack.c.b16 %v707, %v703
        %v832 = vpack.c.b16 %v712, %v708
        %v833 = vpack.c.b16 %v713, %v709
        %v834 = vpack.c.b16 %v714, %v710
        %v835 = vpack.c.b16 %v715, %v711
        %v836 = vpack.c.b16 %v720, %v716
        %v837 = vpack.c.b16 %v721, %v717
        %v838 = vpack.c.b16 %v722, %v718
        %v839 = vpack.c.b16 %v723, %v719
        %v840 = vpack.c.b16 %v728, %v724
        %v841 = vpack.c.b16 %v729, %v725
        %v842 = vpack.c.b16 %v730, %v726
        %v843 = vpack.c.b16 %v731, %v727
        %v844 = vpack.c.b16 %v736, %v732
        %v845 = vpack.c.b16 %v737, %v733
        %v846 = vpack.c.b16 %v738, %v734
        %v847 = vpack.c.b16 %v739, %v735
        %v848 = vpack.c.b16 %v744, %v740
        %v849 = vpack.c.b16 %v745, %v741
        %v850 = vpack.c.b16 %v746, %v742
        %v851 = vpack.c.b16 %v747, %v743
        %v852 = vpack.c.b16 %v752, %v748
        %v853 = vpack.c.b16 %v753, %v749
        %v854 = vpack.c.b16 %v754, %v750
        %v855 = vpack.c.b16 %v755, %v751
        %v856 = vpack.c.b16 %v760, %v756
        %v857 = vpack.c.b16 %v761, %v757
        %v858 = vpack.c.b16 %v762, %v758
        %v859 = vpack.c.b16 %v763, %v759
        %v860 = vpack.c.b16 %v768, %v764
        %v861 = vpack.c.b16 %v769, %v765
        %v862 = vpack.c.b16 %v770, %v766
        %v863 = vpack.c.b16 %v771, %v767
        %v864 = vpack.c.b16 %v776, %v772
        %v865 = vpack.c.b16 %v777, %v773
        %v866 = vpack.c.b16 %v778, %v774
        %v867 = vpack.c.b16 %v779, %v775
        %v868 = vpack.c.b16 %v784, %v780
        %v869 = vpack.c.b16 %v785, %v781
        %v870 = vpack.c.b16 %v786, %v782
        %v871 = vpack.c.b16 %v787, %v783
        %v872 = vpack.c.b16 %v792, %v788
        %v873 = vpack.c.b16 %v793, %v789
        %v874 = vpack.c.b16 %v794, %v790
        %v875 = vpack.c.b16 %v795, %v791
        %v876 = vpack.c.b16 %v800, %v796
        %v877 = vpack.c.b16 %v801, %v797
        %v878 = vpack.c.b16 %v802, %v798
        %v879 = vpack.c.b16 %v803, %v799
        %v880 = vpack.c.b16 %v808, %v804
        %v881 = vpack.c.b16 %v809, %v805
        %v882 = vpack.c.b16 %v810, %v806
        %v883 = vpack.c.b16 %v811, %v807
        %v884 = vpack.c.b16 %v816, %v812
        %v885 = vpack.c.b16 %v817, %v813
        %v886 = vpack.c.b16 %v818, %v814
        %v887 = vpack.c.b16 %v819, %v815
        %v888 = vpack.c.b16 %v824, %v820
        %v889 = vpack.c.b16 %v825, %v821
        %v890 = vpack.c.b16 %v826, %v822
        %v891 = vpack.c.b16 %v827, %v823
        %956 = vmatprep.subr.bf16.mxu0 %v857
        %957 = vmatpush1.bf16.msra.mxu0 %v856
        %958 = vmatprep.subr.bf16.mxu0 %v853
        %959 = vmatpush1.bf16.msra.mxu0 %v852
        %960 = vmatprep.subr.bf16.mxu0 %v849
        %961 = vmatpush1.bf16.msra.mxu0 %v848
        %962 = vmatprep.subr.bf16.mxu0 %v845
        %963 = vmatpush1.bf16.msra.mxu0 %v844
        %964 = vmatprep.subr.bf16.mxu0 %v841
        %965 = vmatpush1.bf16.msra.mxu0 %v840
        %966 = vmatprep.subr.bf16.mxu0 %v837
        %967 = vmatpush1.bf16.msra.mxu0 %v836
        %968 = vmatprep.subr.bf16.mxu0 %v833
        %969 = vmatpush1.bf16.msra.mxu0 %v832
        %970 = vmatprep.subr.bf16.mxu0 %v829
        %971 = vmatpush1.bf16.msra.mxu0 %v828
        %972 = vmatprep.subr.bf16.mxu0 %v889
        %973 = vmatpush2.bf16.msra.mxu0 %v888
        %974 = vmatprep.subr.bf16.mxu0 %v885
        %975 = vmatpush2.bf16.msra.mxu0 %v884
        %976 = vmatprep.subr.bf16.mxu0 %v881
        %977 = vmatpush2.bf16.msra.mxu0 %v880
        %978 = vmatprep.subr.bf16.mxu0 %v877
        %979 = vmatpush2.bf16.msra.mxu0 %v876
        %980 = vmatprep.subr.bf16.mxu0 %v873
        %981 = vmatpush2.bf16.msra.mxu0 %v872
        %982 = vmatprep.subr.bf16.mxu0 %v869
        %983 = vmatpush2.bf16.msra.mxu0 %v868
        %984 = vmatprep.subr.bf16.mxu0 %v865
        %985 = vmatpush2.bf16.msra.mxu0 %v864
        %986 = vmatprep.subr.bf16.mxu0 %v861
        %987 = vmatpush2.bf16.msra.mxu0 %v860
        %988 = vmatprep.mubr.bf16.mxu0 %v570
        %989 = vmatmul.mubr.bf16.gmra.mxu0 %v569
        %v990 = vpop.f32.mrf.mxu0
        %v991 = vadd.f32 0.0, %v990
        %v992 = vpop.f32.mrf.mxu0
        %v993 = vadd.f32 0.0, %v992
        %v994 = vpop.f32.mrf.mxu0
        %v995 = vpop.f32.mrf.mxu0
        %996 = vdwg.mxu0
        %997 = vmatprep.subr.bf16.mxu0 %v859
        %998 = vmatpush1.bf16.msra.mxu0 %v858
        %999 = vmatprep.subr.bf16.mxu0 %v855
        %1000 = vmatpush1.bf16.msra.mxu0 %v854
        %1001 = vmatprep.subr.bf16.mxu0 %v851
        %1002 = vmatpush1.bf16.msra.mxu0 %v850
        %1003 = vmatprep.subr.bf16.mxu0 %v847
        %1004 = vmatpush1.bf16.msra.mxu0 %v846
        %1005 = vmatprep.subr.bf16.mxu0 %v843
        %1006 = vmatpush1.bf16.msra.mxu0 %v842
        %1007 = vmatprep.subr.bf16.mxu0 %v839
        %1008 = vmatpush1.bf16.msra.mxu0 %v838
        %1009 = vmatprep.subr.bf16.mxu0 %v835
        %1010 = vmatpush1.bf16.msra.mxu0 %v834
        %1011 = vmatprep.subr.bf16.mxu0 %v831
        %1012 = vmatpush1.bf16.msra.mxu0 %v830
        %1013 = vmatprep.subr.bf16.mxu0 %v891
        %1014 = vmatpush2.bf16.msra.mxu0 %v890
        %1015 = vmatprep.subr.bf16.mxu0 %v887
        %1016 = vmatpush2.bf16.msra.mxu0 %v886
        %1017 = vmatprep.subr.bf16.mxu0 %v883
        %1018 = vmatpush2.bf16.msra.mxu0 %v882
        %1019 = vmatprep.subr.bf16.mxu0 %v879
        %1020 = vmatpush2.bf16.msra.mxu0 %v878
        %1021 = vmatprep.subr.bf16.mxu0 %v875
        %1022 = vmatpush2.bf16.msra.mxu0 %v874
        %1023 = vmatprep.subr.bf16.mxu0 %v871
        %1024 = vmatpush2.bf16.msra.mxu0 %v870
        %1025 = vmatprep.subr.bf16.mxu0 %v867
        %1026 = vmatpush2.bf16.msra.mxu0 %v866
        %1027 = vmatprep.subr.bf16.mxu0 %v863
        %1028 = vmatpush2.bf16.msra.mxu0 %v862
        %1029 = vmatprep.mubr.bf16.mxu0 %v570
        %1030 = vmatmul.mubr.bf16.gmra.mxu0 %v569
        %v1031 = vpop.f32.mrf.mxu0
        %v1032 = vadd.f32 0.0, %v1031
        %v1033 = vpop.f32.mrf.mxu0
        %v1034 = vadd.f32 0.0, %v1033
        %v1035 = vpop.f32.mrf.mxu0
        %v1036 = vpop.f32.mrf.mxu0
        %1037 = vdwg.mxu0
        %v1042 = vcombine.low %v991, %v993
        %v1043 = vcombine.low %v1032, %v1034
        %v1045 = vunpack.c.l.s4 1983009808
        %v1046 = vunpack.c.0.s8 %v1045
        %v1047 = vlaneseq
        %v1048 = vshrl.u32 %v1047, 7
        %v1049 = vsub.s32 %v1046, %v1048
        %v1050 = vrot.slane %v1042, %v1049
        %v1052 = vunpack.c.l.s4 1983009808
        %v1053 = vunpack.c.0.s8 %v1052
        %v1054 = vlaneseq
        %v1055 = vshrl.u32 %v1054, 7
        %v1056 = vsub.s32 %v1053, %v1055
        %v1057 = vrot.slane %v1043, %v1056
        %v1058 = vcombine.low %v1050, %v1057
        %v1060 = vadd.f32 %v571, %v1058
        %1061 = vst [vmem:[#allocation2] sm:$0xff] %v1060
        %p1062 = scmp.eq.s32.totalorder %s25, 3
        // Predicated region
        $region69: #{discriminator_forward.3} parent=55 // pred_check
          %p1063 = pneg %p1062
        $region70: #{discriminator_forward.3} parent=55 // pred_check_branch
          %1065 = sbr.rel (%p1063) target = $region72
        $region71: #{discriminator_forward.3} parent=55 // pred_region
          %v1066 = vld [vmem:[#allocation2] sm:$0xff]
          %v1067 = vld [vmem:[%s4] sm:$0xf]
          %v1069 = vlaneseq
          %v1070 = vshrl.u32 %v1069, 7
          %v1071 = vsub.s32 0, %v1070
          %v1072 = vrot.slane %v1067, %v1071
          %v1073 = vlaneseq
          %v1074 = vshrl.u32 %v1073, 7
          %v1075 = vsub.s32 1, %v1074
          %v1076 = vrot.slane %v1067, %v1075
          %v1077 = vlaneseq
          %v1078 = vshrl.u32 %v1077, 7
          %v1079 = vsub.s32 2, %v1078
          %v1080 = vrot.slane %v1067, %v1079
          %v1081 = vlaneseq
          %v1082 = vshrl.u32 %v1081, 7
          %v1083 = vsub.s32 3, %v1082
          %v1084 = vrot.slane %v1067, %v1083
          %v1085 = vcombine.low %v1072, %v1076
          %v1086 = vcombine.low %v1080, %v1084
          %v1088 = vunpack.c.l.s4 1983009808
          %v1089 = vunpack.c.0.s8 %v1088
          %v1090 = vlaneseq
          %v1091 = vshrl.u32 %v1090, 7
          %v1092 = vsub.s32 %v1089, %v1091
          %v1093 = vrot.slane %v1085, %v1092
          %v1095 = vunpack.c.l.s4 1983009808
          %v1096 = vunpack.c.0.s8 %v1095
          %v1097 = vlaneseq
          %v1098 = vshrl.u32 %v1097, 7
          %v1099 = vsub.s32 %v1096, %v1098
          %v1100 = vrot.slane %v1086, %v1099
          %v1101 = vcombine.low %v1093, %v1100
          %v1103 = vadd.f32 %v1066, %v1101
          %vm1104 = vcmp.gt.f32.partialorder %v1103, 0.0
          %v1105 = vmul.f32 %v1103, 1.442695
          %v1106 = vpow.pop %v1105
          %v1107 = vsub.f32 %v1106, 1.0
          %v1108 = vmul.f32 %v1107, 1.6732632
          %v1109 = vsel %vm1104, %v1103, %v1108
          %v1110 = vmul.f32 %v1109, 1.050701
          %v1112 = vcombine.high %v1110, %v1110
          %v1114 = vunpack.c.l.s4 1983009808
          %v1115 = vunpack.c.0.s8 %v1114
          %v1116 = vlaneseq
          %v1117 = vshrl.u32 %v1116, 7
          %v1118 = vsub.s32 %v1115, %v1117
          %v1119 = vrot.slane %v1110, %v1118
          %v1121 = vunpack.c.l.s4 1983009808
          %v1122 = vunpack.c.0.s8 %v1121
          %v1123 = vlaneseq
          %v1124 = vshrl.u32 %v1123, 7
          %v1125 = vsub.s32 %v1122, %v1124
          %v1126 = vrot.slane %v1112, %v1125
          %v1127 = vcombine.high %v1119, %v1119
          %v1128 = vcombine.high %v1126, %v1126
          %v1133 = vpack.c.bf16 %v1119, %v1119
          %v1134 = vpack.c.bf16 %v1127, %v1127
          %v1135 = vpack.c.bf16 %v1126, %v1126
          %v1136 = vpack.c.bf16 %v1128, %v1128
          %v1137 = vld [vmem:[#allocation6] sm:$0xff]
          %v1138 = vld [vmem:[#allocation6 + $0x8] sm:$0xff]
          %v1139 = vld [vmem:[#allocation6 + $0x10] sm:$0xff]
          %v1140 = vld [vmem:[#allocation6 + $0x18] sm:$0xff]
          %v1141 = vld [vmem:[#allocation6 + $0x20] sm:$0xff]
          %v1142 = vld [vmem:[#allocation6 + $0x28] sm:$0xff]
          %v1143 = vld [vmem:[#allocation6 + $0x30] sm:$0xff]
          %v1144 = vld [vmem:[#allocation6 + $0x38] sm:$0xff]
          %v1145 = vld [vmem:[#allocation6 + $0x40] sm:$0xff]
          %v1146 = vld [vmem:[#allocation6 + $0x48] sm:$0xff]
          %v1147 = vld [vmem:[#allocation6 + $0x50] sm:$0xff]
          %v1148 = vld [vmem:[#allocation6 + $0x58] sm:$0xff]
          %v1149 = vld [vmem:[#allocation6 + $0x60] sm:$0xff]
          %v1150 = vld [vmem:[#allocation6 + $0x68] sm:$0xff]
          %v1151 = vld [vmem:[#allocation6 + $0x70] sm:$0xff]
          %v1152 = vld [vmem:[#allocation6 + $0x78] sm:$0xff]
          %v1153 = vld [vmem:[#allocation6 + $0x80] sm:$0xff]
          %v1154 = vld [vmem:[#allocation6 + $0x88] sm:$0xff]
          %v1155 = vld [vmem:[#allocation6 + $0x90] sm:$0xff]
          %v1156 = vld [vmem:[#allocation6 + $0x98] sm:$0xff]
          %v1157 = vld [vmem:[#allocation6 + $0xa0] sm:$0xff]
          %v1158 = vld [vmem:[#allocation6 + $0xa8] sm:$0xff]
          %v1159 = vld [vmem:[#allocation6 + $0xb0] sm:$0xff]
          %v1160 = vld [vmem:[#allocation6 + $0xb8] sm:$0xff]
          %v1161 = vld [vmem:[#allocation6 + $0xc0] sm:$0xff]
          %v1162 = vld [vmem:[#allocation6 + $0xc8] sm:$0xff]
          %v1163 = vld [vmem:[#allocation6 + $0xd0] sm:$0xff]
          %v1164 = vld [vmem:[#allocation6 + $0xd8] sm:$0xff]
          %v1165 = vld [vmem:[#allocation6 + $0xe0] sm:$0xff]
          %v1166 = vld [vmem:[#allocation6 + $0xe8] sm:$0xff]
          %v1167 = vld [vmem:[#allocation6 + $0xf0] sm:$0xff]
          %v1168 = vld [vmem:[#allocation6 + $0xf8] sm:$0xff]
          %v1169 = vld [vmem:[#allocation6 + $0x100] sm:$0xff]
          %v1170 = vld [vmem:[#allocation6 + $0x108] sm:$0xff]
          %v1171 = vld [vmem:[#allocation6 + $0x110] sm:$0xff]
          %v1172 = vld [vmem:[#allocation6 + $0x118] sm:$0xff]
          %v1173 = vld [vmem:[#allocation6 + $0x120] sm:$0xff]
          %v1174 = vld [vmem:[#allocation6 + $0x128] sm:$0xff]
          %v1175 = vld [vmem:[#allocation6 + $0x130] sm:$0xff]
          %v1176 = vld [vmem:[#allocation6 + $0x138] sm:$0xff]
          %v1177 = vld [vmem:[#allocation6 + $0x140] sm:$0xff]
          %v1178 = vld [vmem:[#allocation6 + $0x148] sm:$0xff]
          %v1179 = vld [vmem:[#allocation6 + $0x150] sm:$0xff]
          %v1180 = vld [vmem:[#allocation6 + $0x158] sm:$0xff]
          %v1181 = vld [vmem:[#allocation6 + $0x160] sm:$0xff]
          %v1182 = vld [vmem:[#allocation6 + $0x168] sm:$0xff]
          %v1183 = vld [vmem:[#allocation6 + $0x170] sm:$0xff]
          %v1184 = vld [vmem:[#allocation6 + $0x178] sm:$0xff]
          %v1185 = vld [vmem:[#allocation6 + $0x180] sm:$0xff]
          %v1186 = vld [vmem:[#allocation6 + $0x188] sm:$0xff]
          %v1187 = vld [vmem:[#allocation6 + $0x190] sm:$0xff]
          %v1188 = vld [vmem:[#allocation6 + $0x198] sm:$0xff]
          %v1189 = vld [vmem:[#allocation6 + $0x1a0] sm:$0xff]
          %v1190 = vld [vmem:[#allocation6 + $0x1a8] sm:$0xff]
          %v1191 = vld [vmem:[#allocation6 + $0x1b0] sm:$0xff]
          %v1192 = vld [vmem:[#allocation6 + $0x1b8] sm:$0xff]
          %v1193 = vld [vmem:[#allocation6 + $0x1c0] sm:$0xff]
          %v1194 = vld [vmem:[#allocation6 + $0x1c8] sm:$0xff]
          %v1195 = vld [vmem:[#allocation6 + $0x1d0] sm:$0xff]
          %v1196 = vld [vmem:[#allocation6 + $0x1d8] sm:$0xff]
          %v1197 = vld [vmem:[#allocation6 + $0x1e0] sm:$0xff]
          %v1198 = vld [vmem:[#allocation6 + $0x1e8] sm:$0xff]
          %v1199 = vld [vmem:[#allocation6 + $0x1f0] sm:$0xff]
          %v1200 = vld [vmem:[#allocation6 + $0x1f8] sm:$0xff]
          %v1201 = vld [vmem:[%s6] sm:$0x3]
          %v1203 = vlaneseq
          %v1204 = vshrl.u32 %v1203, 7
          %v1205 = vsub.s32 0, %v1204
          %v1206 = vrot.slane %v1201, %v1205
          %v1207 = vlaneseq
          %v1208 = vshrl.u32 %v1207, 7
          %v1209 = vsub.s32 1, %v1208
          %v1210 = vrot.slane %v1201, %v1209
          %v1277 = vunpack.c.l.b16 %v1137
          %v1278 = vunpack.c.h.b16 %v1137
          %v1279 = vunpack.c.l.b16 %v1138
          %v1280 = vunpack.c.h.b16 %v1138
          %v1281 = vunpack.c.l.b16 %v1139
          %v1282 = vunpack.c.h.b16 %v1139
          %v1283 = vunpack.c.l.b16 %v1140
          %v1284 = vunpack.c.h.b16 %v1140
          %v1285 = vunpack.c.l.b16 %v1141
          %v1286 = vunpack.c.h.b16 %v1141
          %v1287 = vunpack.c.l.b16 %v1142
          %v1288 = vunpack.c.h.b16 %v1142
          %v1289 = vunpack.c.l.b16 %v1143
          %v1290 = vunpack.c.h.b16 %v1143
          %v1291 = vunpack.c.l.b16 %v1144
          %v1292 = vunpack.c.h.b16 %v1144
          %v1293 = vunpack.c.l.b16 %v1145
          %v1294 = vunpack.c.h.b16 %v1145
          %v1295 = vunpack.c.l.b16 %v1146
          %v1296 = vunpack.c.h.b16 %v1146
          %v1297 = vunpack.c.l.b16 %v1147
          %v1298 = vunpack.c.h.b16 %v1147
          %v1299 = vunpack.c.l.b16 %v1148
          %v1300 = vunpack.c.h.b16 %v1148
          %v1301 = vunpack.c.l.b16 %v1149
          %v1302 = vunpack.c.h.b16 %v1149
          %v1303 = vunpack.c.l.b16 %v1150
          %v1304 = vunpack.c.h.b16 %v1150
          %v1305 = vunpack.c.l.b16 %v1151
          %v1306 = vunpack.c.h.b16 %v1151
          %v1307 = vunpack.c.l.b16 %v1152
          %v1308 = vunpack.c.h.b16 %v1152
          %v1309 = vunpack.c.l.b16 %v1153
          %v1310 = vunpack.c.h.b16 %v1153
          %v1311 = vunpack.c.l.b16 %v1154
          %v1312 = vunpack.c.h.b16 %v1154
          %v1313 = vunpack.c.l.b16 %v1155
          %v1314 = vunpack.c.h.b16 %v1155
          %v1315 = vunpack.c.l.b16 %v1156
          %v1316 = vunpack.c.h.b16 %v1156
          %v1317 = vunpack.c.l.b16 %v1157
          %v1318 = vunpack.c.h.b16 %v1157
          %v1319 = vunpack.c.l.b16 %v1158
          %v1320 = vunpack.c.h.b16 %v1158
          %v1321 = vunpack.c.l.b16 %v1159
          %v1322 = vunpack.c.h.b16 %v1159
          %v1323 = vunpack.c.l.b16 %v1160
          %v1324 = vunpack.c.h.b16 %v1160
          %v1325 = vunpack.c.l.b16 %v1161
          %v1326 = vunpack.c.h.b16 %v1161
          %v1327 = vunpack.c.l.b16 %v1162
          %v1328 = vunpack.c.h.b16 %v1162
          %v1329 = vunpack.c.l.b16 %v1163
          %v1330 = vunpack.c.h.b16 %v1163
          %v1331 = vunpack.c.l.b16 %v1164
          %v1332 = vunpack.c.h.b16 %v1164
          %v1333 = vunpack.c.l.b16 %v1165
          %v1334 = vunpack.c.h.b16 %v1165
          %v1335 = vunpack.c.l.b16 %v1166
          %v1336 = vunpack.c.h.b16 %v1166
          %v1337 = vunpack.c.l.b16 %v1167
          %v1338 = vunpack.c.h.b16 %v1167
          %v1339 = vunpack.c.l.b16 %v1168
          %v1340 = vunpack.c.h.b16 %v1168
          %v1341 = vunpack.c.l.b16 %v1169
          %v1342 = vunpack.c.h.b16 %v1169
          %v1343 = vunpack.c.l.b16 %v1170
          %v1344 = vunpack.c.h.b16 %v1170
          %v1345 = vunpack.c.l.b16 %v1171
          %v1346 = vunpack.c.h.b16 %v1171
          %v1347 = vunpack.c.l.b16 %v1172
          %v1348 = vunpack.c.h.b16 %v1172
          %v1349 = vunpack.c.l.b16 %v1173
          %v1350 = vunpack.c.h.b16 %v1173
          %v1351 = vunpack.c.l.b16 %v1174
          %v1352 = vunpack.c.h.b16 %v1174
          %v1353 = vunpack.c.l.b16 %v1175
          %v1354 = vunpack.c.h.b16 %v1175
          %v1355 = vunpack.c.l.b16 %v1176
          %v1356 = vunpack.c.h.b16 %v1176
          %v1357 = vunpack.c.l.b16 %v1177
          %v1358 = vunpack.c.h.b16 %v1177
          %v1359 = vunpack.c.l.b16 %v1178
          %v1360 = vunpack.c.h.b16 %v1178
          %v1361 = vunpack.c.l.b16 %v1179
          %v1362 = vunpack.c.h.b16 %v1179
          %v1363 = vunpack.c.l.b16 %v1180
          %v1364 = vunpack.c.h.b16 %v1180
          %v1365 = vunpack.c.l.b16 %v1181
          %v1366 = vunpack.c.h.b16 %v1181
          %v1367 = vunpack.c.l.b16 %v1182
          %v1368 = vunpack.c.h.b16 %v1182
          %v1369 = vunpack.c.l.b16 %v1183
          %v1370 = vunpack.c.h.b16 %v1183
          %v1371 = vunpack.c.l.b16 %v1184
          %v1372 = vunpack.c.h.b16 %v1184
          %v1373 = vunpack.c.l.b16 %v1185
          %v1374 = vunpack.c.h.b16 %v1185
          %v1375 = vunpack.c.l.b16 %v1186
          %v1376 = vunpack.c.h.b16 %v1186
          %v1377 = vunpack.c.l.b16 %v1187
          %v1378 = vunpack.c.h.b16 %v1187
          %v1379 = vunpack.c.l.b16 %v1188
          %v1380 = vunpack.c.h.b16 %v1188
          %v1381 = vunpack.c.l.b16 %v1189
          %v1382 = vunpack.c.h.b16 %v1189
          %v1383 = vunpack.c.l.b16 %v1190
          %v1384 = vunpack.c.h.b16 %v1190
          %v1385 = vunpack.c.l.b16 %v1191
          %v1386 = vunpack.c.h.b16 %v1191
          %v1387 = vunpack.c.l.b16 %v1192
          %v1388 = vunpack.c.h.b16 %v1192
          %v1389 = vunpack.c.l.b16 %v1193
          %v1390 = vunpack.c.h.b16 %v1193
          %v1391 = vunpack.c.l.b16 %v1194
          %v1392 = vunpack.c.h.b16 %v1194
          %v1393 = vunpack.c.l.b16 %v1195
          %v1394 = vunpack.c.h.b16 %v1195
          %v1395 = vunpack.c.l.b16 %v1196
          %v1396 = vunpack.c.h.b16 %v1196
          %v1397 = vunpack.c.l.b16 %v1197
          %v1398 = vunpack.c.h.b16 %v1197
          %v1399 = vunpack.c.l.b16 %v1198
          %v1400 = vunpack.c.h.b16 %v1198
          %v1401 = vunpack.c.l.b16 %v1199
          %v1402 = vunpack.c.h.b16 %v1199
          %v1403 = vunpack.c.l.b16 %v1200
          %v1404 = vunpack.c.h.b16 %v1200
          %v1405 = vpack.c.b16 %v1279, %v1277
          %v1406 = vpack.c.b16 %v1280, %v1278
          %v1407 = vpack.c.b16 %v1283, %v1281
          %v1408 = vpack.c.b16 %v1284, %v1282
          %v1409 = vpack.c.b16 %v1287, %v1285
          %v1410 = vpack.c.b16 %v1288, %v1286
          %v1411 = vpack.c.b16 %v1291, %v1289
          %v1412 = vpack.c.b16 %v1292, %v1290
          %v1413 = vpack.c.b16 %v1295, %v1293
          %v1414 = vpack.c.b16 %v1296, %v1294
          %v1415 = vpack.c.b16 %v1299, %v1297
          %v1416 = vpack.c.b16 %v1300, %v1298
          %v1417 = vpack.c.b16 %v1303, %v1301
          %v1418 = vpack.c.b16 %v1304, %v1302
          %v1419 = vpack.c.b16 %v1307, %v1305
          %v1420 = vpack.c.b16 %v1308, %v1306
          %v1421 = vpack.c.b16 %v1311, %v1309
          %v1422 = vpack.c.b16 %v1312, %v1310
          %v1423 = vpack.c.b16 %v1315, %v1313
          %v1424 = vpack.c.b16 %v1316, %v1314
          %v1425 = vpack.c.b16 %v1319, %v1317
          %v1426 = vpack.c.b16 %v1320, %v1318
          %v1427 = vpack.c.b16 %v1323, %v1321
          %v1428 = vpack.c.b16 %v1324, %v1322
          %v1429 = vpack.c.b16 %v1327, %v1325
          %v1430 = vpack.c.b16 %v1328, %v1326
          %v1431 = vpack.c.b16 %v1331, %v1329
          %v1432 = vpack.c.b16 %v1332, %v1330
          %v1433 = vpack.c.b16 %v1335, %v1333
          %v1434 = vpack.c.b16 %v1336, %v1334
          %v1435 = vpack.c.b16 %v1339, %v1337
          %v1436 = vpack.c.b16 %v1340, %v1338
          %v1437 = vpack.c.b16 %v1343, %v1341
          %v1438 = vpack.c.b16 %v1344, %v1342
          %v1439 = vpack.c.b16 %v1347, %v1345
          %v1440 = vpack.c.b16 %v1348, %v1346
          %v1441 = vpack.c.b16 %v1351, %v1349
          %v1442 = vpack.c.b16 %v1352, %v1350
          %v1443 = vpack.c.b16 %v1355, %v1353
          %v1444 = vpack.c.b16 %v1356, %v1354
          %v1445 = vpack.c.b16 %v1359, %v1357
          %v1446 = vpack.c.b16 %v1360, %v1358
          %v1447 = vpack.c.b16 %v1363, %v1361
          %v1448 = vpack.c.b16 %v1364, %v1362
          %v1449 = vpack.c.b16 %v1367, %v1365
          %v1450 = vpack.c.b16 %v1368, %v1366
          %v1451 = vpack.c.b16 %v1371, %v1369
          %v1452 = vpack.c.b16 %v1372, %v1370
          %v1453 = vpack.c.b16 %v1375, %v1373
          %v1454 = vpack.c.b16 %v1376, %v1374
          %v1455 = vpack.c.b16 %v1379, %v1377
          %v1456 = vpack.c.b16 %v1380, %v1378
          %v1457 = vpack.c.b16 %v1383, %v1381
          %v1458 = vpack.c.b16 %v1384, %v1382
          %v1459 = vpack.c.b16 %v1387, %v1385
          %v1460 = vpack.c.b16 %v1388, %v1386
          %v1461 = vpack.c.b16 %v1391, %v1389
          %v1462 = vpack.c.b16 %v1392, %v1390
          %v1463 = vpack.c.b16 %v1395, %v1393
          %v1464 = vpack.c.b16 %v1396, %v1394
          %v1465 = vpack.c.b16 %v1399, %v1397
          %v1466 = vpack.c.b16 %v1400, %v1398
          %v1467 = vpack.c.b16 %v1403, %v1401
          %v1468 = vpack.c.b16 %v1404, %v1402
          %1533 = vmatprep.subr.bf16.mxu0 %v1420
          %1534 = vmatpush1.bf16.msra.mxu0 %v1419
          %1535 = vmatprep.subr.bf16.mxu0 %v1418
          %1536 = vmatpush1.bf16.msra.mxu0 %v1417
          %1537 = vmatprep.subr.bf16.mxu0 %v1416
          %1538 = vmatpush1.bf16.msra.mxu0 %v1415
          %1539 = vmatprep.subr.bf16.mxu0 %v1414
          %1540 = vmatpush1.bf16.msra.mxu0 %v1413
          %1541 = vmatprep.subr.bf16.mxu0 %v1412
          %1542 = vmatpush1.bf16.msra.mxu0 %v1411
          %1543 = vmatprep.subr.bf16.mxu0 %v1410
          %1544 = vmatpush1.bf16.msra.mxu0 %v1409
          %1545 = vmatprep.subr.bf16.mxu0 %v1408
          %1546 = vmatpush1.bf16.msra.mxu0 %v1407
          %1547 = vmatprep.subr.bf16.mxu0 %v1406
          %1548 = vmatpush1.bf16.msra.mxu0 %v1405
          %1549 = vmatprep.subr.bf16.mxu0 %v1436
          %1550 = vmatpush2.bf16.msra.mxu0 %v1435
          %1551 = vmatprep.subr.bf16.mxu0 %v1434
          %1552 = vmatpush2.bf16.msra.mxu0 %v1433
          %1553 = vmatprep.subr.bf16.mxu0 %v1432
          %1554 = vmatpush2.bf16.msra.mxu0 %v1431
          %1555 = vmatprep.subr.bf16.mxu0 %v1430
          %1556 = vmatpush2.bf16.msra.mxu0 %v1429
          %1557 = vmatprep.subr.bf16.mxu0 %v1428
          %1558 = vmatpush2.bf16.msra.mxu0 %v1427
          %1559 = vmatprep.subr.bf16.mxu0 %v1426
          %1560 = vmatpush2.bf16.msra.mxu0 %v1425
          %1561 = vmatprep.subr.bf16.mxu0 %v1424
          %1562 = vmatpush2.bf16.msra.mxu0 %v1423
          %1563 = vmatprep.subr.bf16.mxu0 %v1422
          %1564 = vmatpush2.bf16.msra.mxu0 %v1421
          %1565 = vmatprep.mubr.bf16.mxu0 %v1134
          %1566 = vmatmul.mubr.bf16.gmra.mxu0 %v1133
          %v1567 = vpop.f32.mrf.mxu0
          %v1568 = vadd.f32 %v1206, %v1567
          %v1569 = vpop.f32.mrf.mxu0
          %v1570 = vadd.f32 %v1210, %v1569
          %v1571 = vpop.f32.mrf.mxu0
          %v1572 = vpop.f32.mrf.mxu0
          %1573 = vdwg.mxu0
          %1574 = vmatprep.subr.bf16.mxu0 %v1452
          %1575 = vmatpush1.bf16.msra.mxu0 %v1451
          %1576 = vmatprep.subr.bf16.mxu0 %v1450
          %1577 = vmatpush1.bf16.msra.mxu0 %v1449
          %1578 = vmatprep.subr.bf16.mxu0 %v1448
          %1579 = vmatpush1.bf16.msra.mxu0 %v1447
          %1580 = vmatprep.subr.bf16.mxu0 %v1446
          %1581 = vmatpush1.bf16.msra.mxu0 %v1445
          %1582 = vmatprep.subr.bf16.mxu0 %v1444
          %1583 = vmatpush1.bf16.msra.mxu0 %v1443
          %1584 = vmatprep.subr.bf16.mxu0 %v1442
          %1585 = vmatpush1.bf16.msra.mxu0 %v1441
          %1586 = vmatprep.subr.bf16.mxu0 %v1440
          %1587 = vmatpush1.bf16.msra.mxu0 %v1439
          %1588 = vmatprep.subr.bf16.mxu0 %v1438
          %1589 = vmatpush1.bf16.msra.mxu0 %v1437
          %1590 = vmatprep.subr.bf16.mxu0 %v1468
          %1591 = vmatpush2.bf16.msra.mxu0 %v1467
          %1592 = vmatprep.subr.bf16.mxu0 %v1466
          %1593 = vmatpush2.bf16.msra.mxu0 %v1465
          %1594 = vmatprep.subr.bf16.mxu0 %v1464
          %1595 = vmatpush2.bf16.msra.mxu0 %v1463
          %1596 = vmatprep.subr.bf16.mxu0 %v1462
          %1597 = vmatpush2.bf16.msra.mxu0 %v1461
          %1598 = vmatprep.subr.bf16.mxu0 %v1460
          %1599 = vmatpush2.bf16.msra.mxu0 %v1459
          %1600 = vmatprep.subr.bf16.mxu0 %v1458
          %1601 = vmatpush2.bf16.msra.mxu0 %v1457
          %1602 = vmatprep.subr.bf16.mxu0 %v1456
          %1603 = vmatpush2.bf16.msra.mxu0 %v1455
          %1604 = vmatprep.subr.bf16.mxu0 %v1454
          %1605 = vmatpush2.bf16.msra.mxu0 %v1453
          %1606 = vmatprep.mubr.bf16.mxu0 %v1136
          %1607 = vmatmul.mubr.bf16.gmra.mxu0 %v1135
          %v1608 = vpop.f32.mrf.mxu0
          %v1609 = vadd.f32 %v1568, %v1608
          %v1610 = vpop.f32.mrf.mxu0
          %v1611 = vadd.f32 %v1570, %v1610
          %v1612 = vpop.f32.mrf.mxu0
          %v1613 = vpop.f32.mrf.mxu0
          %1614 = vdwg.mxu0
          %vm1615 = vcmp.gt.f32.partialorder %v1609, 0.0
          %vm1616 = vcmp.gt.f32.partialorder %v1611, 0.0
          %v1617 = vmul.f32 %v1609, 1.442695
          %v1618 = vpow.pop %v1617
          %v1619 = vmul.f32 %v1611, 1.442695
          %v1620 = vpow.pop %v1619
          %v1621 = vsub.f32 %v1618, 1.0
          %v1622 = vsub.f32 %v1620, 1.0
          %v1623 = vmul.f32 %v1621, 1.6732632
          %v1624 = vmul.f32 %v1622, 1.6732632
          %v1625 = vsel %vm1615, %v1609, %v1623
          %v1626 = vsel %vm1616, %v1611, %v1624
          %v1627 = vmul.f32 %v1625, 1.050701
          %v1628 = vmul.f32 %v1626, 1.050701
          %v1629 = vpack.c.bf16 %v1627, %v1627
          %v1630 = vpack.c.bf16 %v1628, %v1628
          %v1631 = vld [vmem:[%s7] sm:$0xf]
          %v1632 = vld [vmem:[%s7 + $0x4] sm:$0xf]
          %v1633 = vld [vmem:[%s7 + $0x8] sm:$0xf]
          %v1634 = vld [vmem:[%s7 + $0xc] sm:$0xf]
          %v1635 = vld [vmem:[%s7 + $0x10] sm:$0xf]
          %v1636 = vld [vmem:[%s7 + $0x14] sm:$0xf]
          %v1637 = vld [vmem:[%s7 + $0x18] sm:$0xf]
          %v1638 = vld [vmem:[%s7 + $0x1c] sm:$0xf]
          %v1639 = vld [vmem:[%s7 + $0x20] sm:$0xf]
          %v1640 = vld [vmem:[%s7 + $0x24] sm:$0xf]
          %v1641 = vld [vmem:[%s7 + $0x28] sm:$0xf]
          %v1642 = vld [vmem:[%s7 + $0x2c] sm:$0xf]
          %v1643 = vld [vmem:[%s7 + $0x30] sm:$0xf]
          %v1644 = vld [vmem:[%s7 + $0x34] sm:$0xf]
          %v1645 = vld [vmem:[%s7 + $0x38] sm:$0xf]
          %v1646 = vld [vmem:[%s7 + $0x3c] sm:$0xf]
          %v1647 = vld [vmem:[%s7 + $0x40] sm:$0xf]
          %v1648 = vld [vmem:[%s7 + $0x44] sm:$0xf]
          %v1649 = vld [vmem:[%s7 + $0x48] sm:$0xf]
          %v1650 = vld [vmem:[%s7 + $0x4c] sm:$0xf]
          %v1651 = vld [vmem:[%s7 + $0x50] sm:$0xf]
          %v1652 = vld [vmem:[%s7 + $0x54] sm:$0xf]
          %v1653 = vld [vmem:[%s7 + $0x58] sm:$0xf]
          %v1654 = vld [vmem:[%s7 + $0x5c] sm:$0xf]
          %v1655 = vld [vmem:[%s7 + $0x60] sm:$0xf]
          %v1656 = vld [vmem:[%s7 + $0x64] sm:$0xf]
          %v1657 = vld [vmem:[%s7 + $0x68] sm:$0xf]
          %v1658 = vld [vmem:[%s7 + $0x6c] sm:$0xf]
          %v1659 = vld [vmem:[%s7 + $0x70] sm:$0xf]
          %v1660 = vld [vmem:[%s7 + $0x74] sm:$0xf]
          %v1661 = vld [vmem:[%s7 + $0x78] sm:$0xf]
          %v1662 = vld [vmem:[%s7 + $0x7c] sm:$0xf]
          %v1663 = vld [vmem:[%s8] sm:$0x1]
          %v1665 = vlaneseq
          %v1666 = vshrl.u32 %v1665, 7
          %v1667 = vsub.s32 0, %v1666
          %v1668 = vrot.slane %v1663, %v1667
          %v1702 = vunpack.c.l.b16 %v1631
          %v1703 = vunpack.c.l.b16 %v1632
          %v1704 = vunpack.c.l.b16 %v1633
          %v1705 = vunpack.c.l.b16 %v1634
          %v1706 = vunpack.c.l.b16 %v1635
          %v1707 = vunpack.c.l.b16 %v1636
          %v1708 = vunpack.c.l.b16 %v1637
          %v1709 = vunpack.c.l.b16 %v1638
          %v1710 = vunpack.c.l.b16 %v1639
          %v1711 = vunpack.c.l.b16 %v1640
          %v1712 = vunpack.c.l.b16 %v1641
          %v1713 = vunpack.c.l.b16 %v1642
          %v1714 = vunpack.c.l.b16 %v1643
          %v1715 = vunpack.c.l.b16 %v1644
          %v1716 = vunpack.c.l.b16 %v1645
          %v1717 = vunpack.c.l.b16 %v1646
          %v1718 = vunpack.c.l.b16 %v1647
          %v1719 = vunpack.c.l.b16 %v1648
          %v1720 = vunpack.c.l.b16 %v1649
          %v1721 = vunpack.c.l.b16 %v1650
          %v1722 = vunpack.c.l.b16 %v1651
          %v1723 = vunpack.c.l.b16 %v1652
          %v1724 = vunpack.c.l.b16 %v1653
          %v1725 = vunpack.c.l.b16 %v1654
          %v1726 = vunpack.c.l.b16 %v1655
          %v1727 = vunpack.c.l.b16 %v1656
          %v1728 = vunpack.c.l.b16 %v1657
          %v1729 = vunpack.c.l.b16 %v1658
          %v1730 = vunpack.c.l.b16 %v1659
          %v1731 = vunpack.c.l.b16 %v1660
          %v1732 = vunpack.c.l.b16 %v1661
          %v1733 = vunpack.c.l.b16 %v1662
          %v1734 = vpack.c.b16 %v1703, %v1702
          %v1735 = vpack.c.b16 %v1705, %v1704
          %v1736 = vpack.c.b16 %v1707, %v1706
          %v1737 = vpack.c.b16 %v1709, %v1708
          %v1738 = vpack.c.b16 %v1711, %v1710
          %v1739 = vpack.c.b16 %v1713, %v1712
          %v1740 = vpack.c.b16 %v1715, %v1714
          %v1741 = vpack.c.b16 %v1717, %v1716
          %v1742 = vpack.c.b16 %v1719, %v1718
          %v1743 = vpack.c.b16 %v1721, %v1720
          %v1744 = vpack.c.b16 %v1723, %v1722
          %v1745 = vpack.c.b16 %v1725, %v1724
          %v1746 = vpack.c.b16 %v1727, %v1726
          %v1747 = vpack.c.b16 %v1729, %v1728
          %v1748 = vpack.c.b16 %v1731, %v1730
          %v1749 = vpack.c.b16 %v1733, %v1732
          %1766 = vmatprep.subr.bf16.mxu0 0
          %1767 = vmatpush1.bf16.msra.mxu0 %v1741
          %1768 = vmatprep.subr.bf16.mxu0 0
          %1769 = vmatpush1.bf16.msra.mxu0 %v1740
          %1770 = vmatprep.subr.bf16.mxu0 0
          %1771 = vmatpush1.bf16.msra.mxu0 %v1739
          %1772 = vmatprep.subr.bf16.mxu0 0
          %1773 = vmatpush1.bf16.msra.mxu0 %v1738
          %1774 = vmatprep.subr.bf16.mxu0 0
          %1775 = vmatpush1.bf16.msra.mxu0 %v1737
          %1776 = vmatprep.subr.bf16.mxu0 0
          %1777 = vmatpush1.bf16.msra.mxu0 %v1736
          %1778 = vmatprep.subr.bf16.mxu0 0
          %1779 = vmatpush1.bf16.msra.mxu0 %v1735
          %1780 = vmatprep.subr.bf16.mxu0 0
          %1781 = vmatpush1.bf16.msra.mxu0 %v1734
          %1782 = vmatprep.subr.bf16.mxu0 0
          %1783 = vmatpush2.bf16.msra.mxu0 %v1749
          %1784 = vmatprep.subr.bf16.mxu0 0
          %1785 = vmatpush2.bf16.msra.mxu0 %v1748
          %1786 = vmatprep.subr.bf16.mxu0 0
          %1787 = vmatpush2.bf16.msra.mxu0 %v1747
          %1788 = vmatprep.subr.bf16.mxu0 0
          %1789 = vmatpush2.bf16.msra.mxu0 %v1746
          %1790 = vmatprep.subr.bf16.mxu0 0
          %1791 = vmatpush2.bf16.msra.mxu0 %v1745
          %1792 = vmatprep.subr.bf16.mxu0 0
          %1793 = vmatpush2.bf16.msra.mxu0 %v1744
          %1794 = vmatprep.subr.bf16.mxu0 0
          %1795 = vmatpush2.bf16.msra.mxu0 %v1743
          %1796 = vmatprep.subr.bf16.mxu0 0
          %1797 = vmatpush2.bf16.msra.mxu0 %v1742
          %1798 = vmatprep.mubr.bf16.mxu0 %v1630
          %1799 = vmatmul.mubr.bf16.gmra.mxu0 %v1629
          %v1800 = vpop.f32.mrf.mxu0
          %v1801 = vadd.f32 %v1668, %v1800
          %v1802 = vpop.f32.mrf.mxu0
          %v1803 = vpop.f32.mrf.mxu0
          %v1804 = vpop.f32.mrf.mxu0
          %1805 = vdwg.mxu0
          %v1806 = vsub.f32 0.0, %v1801
          %v1807 = vmul.f32 %v1806, 1.442695
          %v1808 = vpow.pop %v1807
          %v1809 = vadd.f32 %v1808, 1.0
          %v1810 = vrcp.pop %v1809
          %1811 = vst [vmem:[#allocation8] sm:$0x3] %v1810
        $region72: #{discriminator_forward.3} parent=55 // pred_fallthru
          _
        // Predicated region
        $region73: #{discriminator_forward.3} parent=55 // pred_check
          %p1812 = pneg %p242
        $region74: #{discriminator_forward.3} parent=55 // pred_check_branch
          %1814 = sbr.rel (%p1812) target = $region76
        $region75: #{discriminator_forward.3} parent=55 // pred_region
          %s1816 = ssub.s32 32, 32
          %1817 = vsyncadd [#allocation5], %s1816
          %s1819 = sshll.u32 [#allocation8], 4
          %s1820 = int_to_ptr.vmem [resolvable:$true] %s1819
          %1822 = dma.vmem_to_hbm [thread:$0]  %s1820, 32, %s9, [#allocation5]
        $region76: #{discriminator_forward.3} parent=55 // pred_fallthru
          _
        // Predicated region
        $region77: #{discriminator_forward.3} parent=55 // pred_check
          %p1823 = pneg %p242
        $region78: #{discriminator_forward.3} parent=55 // pred_check_branch
          %1825 = sbr.rel (%p1823) target = $region80
        $region79: #{discriminator_forward.3} parent=55 // pred_region
          %1826 = dma.done [#allocation5], 32
        $region80: #{discriminator_forward.3} parent=55 // pred_fallthru
          _
      $region56: #{discriminator_forward.3} parent=5 // pred_fallthru
        _
      %p1827 = scmp.le.s32.totalorder 2, %s20
      // Predicated region
      $region81: #{discriminator_forward.3} parent=5 // pred_check
        %p1828 = pneg %p1827
      $region82: #{discriminator_forward.3} parent=5 // pred_check_branch
        %1830 = sbr.rel (%p1828) target = $region84
      $region83: #{discriminator_forward.3} parent=5 // pred_region
        %s1831 = ssub.s32 %s20, 2
      $region84: #{discriminator_forward.3} parent=5 // pred_fallthru
        _
    $region6: #{discriminator_forward.3} parent=1 // loop_footer
      %s24 = sadd.s32 1, %s20
    $region7: #{discriminator_forward.3} parent=1 // loop_footer_branch
      %19 = sbr.rel target = $region3
    $region8: #{discriminator_forward.3} parent=1 // loop_exit
      _
    %1832 = vsyncpa [#allocation4], 1
    %s1833 = scalar_lea.sflag [#allocation4], 1
    %1834 = vsyncpa %s1833, 1
    %1835 = vsyncpa [#allocation7], 1
    %1836 = vsyncpa [#allocation5], 1
    %s1837 = scalar_lea.sflag [#allocation5], 1
    %1838 = vsyncpa %s1837, 1

</llo_original>
